<compile_context>
chip_gen: v5e
topology: v5e:2x2
jax: 0.10.0
libtpu: 0.0.40
codegen_flags: <defaults>
</compile_context>

<pallas_src>
import jax
import jax.numpy as jnp
from jax.experimental import pallas as pl
from jax.experimental.pallas import tpu as pltpu

NUM_CLASSES = 3          # synthetic choice; cls head emits num_classes + 1
BACKBONE_C = 960         # MobileNetV3-Large features out channels
FEAT_W = 7               # backbone_out_w
HEAD_C1 = 256
HEAD_C2 = 128
PATCH = 16               # stand-in backbone patch size (112/16 = 7)
BN_EPS = 1e-5
N_OUT = 4 + NUM_CLASSES + 1   # 4 bbox + (num_classes + 1) cls/objectness = 8
N_PAD = 128              # lane-dense padded output width
TM_DEFAULT = 128         # M tile (use 256 on v6e/v7x for large batches)
TK = 256                 # K tile for streaming w1


def _momi_kernel(xp_ref, w1_ref, w2b_ref, w2c_ref, w3_ref, bias_ref,
                 out_ref, acc_ref):
    k = pl.program_id(1)

    @pl.when(k == 0)
    def _():
        acc_ref[...] = jnp.zeros_like(acc_ref)

    # Layer 1 (stand-in backbone + both heads' first 1x1 conv, pre-folded),
    # accumulated over streamed K chunks of w1.
    acc_ref[...] += jnp.dot(xp_ref[...], w1_ref[...],
                            preferred_element_type=jnp.float32)

    @pl.when(k == pl.num_programs(1) - 1)
    def _():
        biases = bias_ref[...]                        # (3, 512) f32
        b1 = biases[0]                                # (512,)
        b2 = biases[1, : 2 * HEAD_C2]                 # (256,)
        b3 = biases[2, :N_PAD]                        # (128,) padded

        h1 = jnp.maximum(acc_ref[...] + b1, 0.0)      # (TM, 512) f32
        h1b = h1[:, :HEAD_C1].astype(jnp.bfloat16)    # bbox branch (TM, 256)
        h1c = h1[:, HEAD_C1:].astype(jnp.bfloat16)    # cls  branch (TM, 256)

        # Layer 2: dense per-head 1x1 conv (BN1 folded), no zero halves.
        h2b = jnp.maximum(
            jnp.dot(h1b, w2b_ref[...], preferred_element_type=jnp.float32)
            + b2[:HEAD_C2], 0.0)                      # (TM, 128) f32
        h2c = jnp.maximum(
            jnp.dot(h1c, w2c_ref[...], preferred_element_type=jnp.float32)
            + b2[HEAD_C2:], 0.0)                      # (TM, 128) f32
        h2 = jnp.concatenate([h2b, h2c], axis=1).astype(jnp.bfloat16)

        # Layer 3: lane-dense padded final 1x1 conv (BN2 folded) -> (TM, 128).
        out = jnp.dot(h2, w3_ref[...],
                      preferred_element_type=jnp.float32) + b3

        # Cols 0..3 bbox logits (Sigmoid); cols 4..7 raw cls logits; rest 0.
        col = jax.lax.broadcasted_iota(jnp.int32, out.shape, 1)
        out_ref[...] = jnp.where(col < 4, jax.nn.sigmoid(out), out)


def prepare_params(params):
    """One-time (outside the hot path) exact folding + packing of parameters."""
    def fold_bn(head_p):
        # Conv -> ReLU -> BN -> Dropout(id) -> Conv ...
        # (h*s + t) @ W + b == h @ (s[:,None]*W) + (t @ W + b)   (exact, eval)
        w1, b1, s1, t1, w2, b2, s2, t2, w3, b3 = head_p
        w2f = s1[:, None] * w2
        b2f = t1 @ w2 + b2
        w3f = s2[:, None] * w3
        b3f = t2 @ w3 + b3
        return w1, b1, w2f, b2f, w3f, b3f

    w1b, b1b, w2b, b2b, w3b, b3b = fold_bn(params["bbox"])
    w1c, b1c, w2c, b2c, w3c, b3c = fold_bn(params["cls"])

    # Fuse both heads' first conv and pre-fold the linear stand-in backbone:
    #   relu((xp @ wp + bp) @ w1 + b1) == relu(xp @ (wp @ w1) + (bp @ w1 + b1))
    w1_cat = jnp.concatenate([w1b, w1c], axis=1)            # (960, 512)
    b1_cat = jnp.concatenate([b1b, b1c], axis=0)            # (512,)
    w1f = params["wp"] @ w1_cat                              # (768, 512)
    b1f = params["bp"] @ w1_cat + b1_cat                     # (512,)

    b2_cat = jnp.concatenate([b2b, b2c], axis=0)             # (256,)

    # Lane-dense padded layer-3 weight: (256, 128). Cols 0..3 bbox, 4..7 cls.
    w3_pad = jnp.zeros((2 * HEAD_C2, N_PAD), jnp.float32)
    w3_pad = w3_pad.at[:HEAD_C2, :4].set(w3b)
    w3_pad = w3_pad.at[HEAD_C2:, 4:4 + NUM_CLASSES + 1].set(w3c)
    b3_pad = jnp.zeros((N_PAD,), jnp.float32)
    b3_pad = b3_pad.at[:4].set(b3b)
    b3_pad = b3_pad.at[4:4 + NUM_CLASSES + 1].set(b3c)

    # Pack all biases into a single (3, 512) f32 array (one DMA descriptor).
    biases = jnp.zeros((3, 2 * HEAD_C1), jnp.float32)
    biases = biases.at[0, :].set(b1f)
    biases = biases.at[1, : 2 * HEAD_C2].set(b2_cat)
    biases = biases.at[2, :N_PAD].set(b3_pad)

    return {
        "w1": w1f.astype(jnp.bfloat16),      # (768, 512)
        "w2b": w2b.astype(jnp.bfloat16),     # (256, 128) bbox, BN folded
        "w2c": w2c.astype(jnp.bfloat16),     # (256, 128) cls,  BN folded
        "w3": w3_pad.astype(jnp.bfloat16),   # (256, 128) lane-dense padded
        "biases": biases,                    # (3, 512) f32
    }


def momi_forward(x, prep, *, tm=TM_DEFAULT):
    """x: float32 NCHW image batch (B, 3, 112, 112).
    Returns (bbox_pred (B,49,4), class_pred (B,49,num_classes), objectness (B,49,1))."""
    B, C, H, W = x.shape
    gh, gw = H // PATCH, W // PATCH
    M = B * gh * gw
    K = C * PATCH * PATCH
    assert K % TK == 0

    # Glue: cast to bf16 BEFORE the transpose (halves transposed bytes), then
    # patchify NCHW -> (M, 768) rows and pad M to a multiple of the M tile.
    xb = x.astype(jnp.bfloat16)
    xp = xb.reshape(B, C, gh, PATCH, gw, PATCH)
    xp = xp.transpose(0, 2, 4, 1, 3, 5).reshape(M, K)
    m_pad = ((M + tm - 1) // tm) * tm
    if m_pad != M:
        xp = jnp.pad(xp, ((0, m_pad - M), (0, 0)))

    grid = (m_pad // tm, K // TK)

    out = pl.pallas_call(
        _momi_kernel,
        out_shape=jax.ShapeDtypeStruct((m_pad, N_PAD), jnp.float32),
        grid=grid,
        in_specs=[
            pl.BlockSpec((tm, TK), lambda i, k: (i, k)),                # xp
            pl.BlockSpec((TK, 2 * HEAD_C1), lambda i, k: (k, 0)),       # w1 (streamed over K)
            pl.BlockSpec((HEAD_C1, HEAD_C2), lambda i, k: (0, 0)),      # w2 bbox (resident)
            pl.BlockSpec((HEAD_C1, HEAD_C2), lambda i, k: (0, 0)),      # w2 cls  (resident)
            pl.BlockSpec((2 * HEAD_C2, N_PAD), lambda i, k: (0, 0)),    # w3 padded (resident)
            pl.BlockSpec((3, 2 * HEAD_C1), lambda i, k: (0, 0)),        # packed biases
        ],
        out_specs=pl.BlockSpec((tm, N_PAD), lambda i, k: (i, 0)),
        scratch_shapes=[pltpu.VMEM((tm, 2 * HEAD_C1), jnp.float32)],
        compiler_params=pltpu.CompilerParams(
            dimension_semantics=("parallel", "arbitrary")),
    )(xp, prep["w1"], prep["w2b"], prep["w2c"], prep["w3"], prep["biases"])

    # Glue: drop M padding + lane padding; reproduce view/permute + cls split.
    out = out[:M, :N_OUT]
    bbox_pred = out[:, :4].reshape(B, gh * gw, 4)
    cls_pred = out[:, 4:].reshape(B, gh * gw, NUM_CLASSES + 1)
    class_pred = cls_pred[..., :-1]
    objectness_pred = cls_pred[..., -1:]
    return bbox_pred, class_pred, objectness_pred


def init_params(key):
    """Deterministic synthetic parameters matching the module's __init__ shapes
    (1x1 conv weights stored transposed as (C_in, C_out) for channels-last)."""
    def conv(k, cin, cout, scale=0.05):
        kw, kb = jax.random.split(k)
        w = scale * jax.random.normal(kw, (cin, cout), jnp.float32)
        b = scale * jax.random.normal(kb, (cout,), jnp.float32)
        return w, b

    def bn(k, c):
        kg, kb, km, kv = jax.random.split(k, 4)
        gamma = 1.0 + 0.1 * jax.random.normal(kg, (c,), jnp.float32)
        beta = 0.1 * jax.random.normal(kb, (c,), jnp.float32)
        mean = 0.1 * jax.random.normal(km, (c,), jnp.float32)
        var = 1.0 + jnp.abs(jax.random.normal(kv, (c,), jnp.float32))
        scale = gamma / jnp.sqrt(var + BN_EPS)
        shift = beta - mean * scale
        return scale, shift

    def head(k, c_final):
        ks = jax.random.split(k, 5)
        w1, b1 = conv(ks[0], BACKBONE_C, HEAD_C1)
        s1, t1 = bn(ks[1], HEAD_C1)
        w2, b2 = conv(ks[2], HEAD_C1, HEAD_C2)
        s2, t2 = bn(ks[3], HEAD_C2)
        w3, b3 = conv(ks[4], HEAD_C2, c_final)
        return (w1, b1, s1, t1, w2, b2, s2, t2, w3, b3)

    kp, kbb, kc = jax.random.split(key, 3)
    wp, bp = conv(kp, 3 * PATCH * PATCH, BACKBONE_C, scale=0.02)
    return {
        "wp": wp,
        "bp": bp,
        "bbox": head(kbb, 4),
        "cls": head(kc, NUM_CLASSES + 1),
    }


def reference_forward(x, params):
    """Pure-JAX f32 reference (no fusion/folding) for correctness checking."""
    B, C, H, W = x.shape
    gh, gw = H // PATCH, W // PATCH
    xp = x.reshape(B, C, gh, PATCH, gw, PATCH)
    xp = xp.transpose(0, 2, 4, 1, 3, 5).reshape(B * gh * gw, C * PATCH * PATCH)
    feats = xp @ params["wp"] + params["bp"]

    def head(p):
        w1, b1, s1, t1, w2, b2, s2, t2, w3, b3 = p
        h = jnp.maximum(feats @ w1 + b1, 0.0) * s1 + t1      # Conv,ReLU,BN,Drop(id)
        h = jnp.maximum(h @ w2 + b2, 0.0) * s2 + t2
        return h @ w3 + b3

    bbox = jax.nn.sigmoid(head(params["bbox"])).reshape(B, gh * gw, 4)
    cls = head(params["cls"]).reshape(B, gh * gw, NUM_CLASSES + 1)
    return bbox, cls[..., :-1], cls[..., -1:]


if __name__ == "__main__":
    key = jax.random.PRNGKey(0)
    k_x, k_p = jax.random.split(key)
    x = jax.random.normal(k_x, (2, 3, 112, 112), jnp.float32)
    params = init_params(k_p)
    prep = prepare_params(params)          # one-time weight folding / packing

    fwd = jax.jit(momi_forward)
    bbox_pred, class_pred, objectness_pred = fwd(x, prep)
    jax.block_until_ready((bbox_pred, class_pred, objectness_pred))

    assert bbox_pred.shape == (2, FEAT_W * FEAT_W, 4)
    assert class_pred.shape == (2, FEAT_W * FEAT_W, NUM_CLASSES)
    assert objectness_pred.shape == (2, FEAT_W * FEAT_W, 1)
    assert bool(jnp.all(jnp.isfinite(bbox_pred)))
    assert bool(jnp.all((bbox_pred >= 0.0) & (bbox_pred <= 1.0)))   # sigmoid range

    # Numerical check vs. unfused f32 reference (bf16 matmul tolerance).
    rb, rc, ro = reference_forward(x, params)
    assert bool(jnp.allclose(bbox_pred, rb, atol=5e-2, rtol=5e-2))
    assert bool(jnp.allclose(class_pred, rc, atol=5e-2, rtol=5e-2))
    assert bool(jnp.allclose(objectness_pred, ro, atol=5e-2, rtol=5e-2))

    print("KERNEL_OK")
</pallas_src>

<mosaic_0001>
module attributes {stable_mosaic.version = 11 : i64} {
  func.func @_momi_kernel(%arg0: i32, %arg1: i32, %arg2: memref<128x256xbf16, #tpu.memory_space<vmem>>, %arg3: memref<256x512xbf16, #tpu.memory_space<vmem>>, %arg4: memref<256x128xbf16, #tpu.memory_space<vmem>>, %arg5: memref<256x128xbf16, #tpu.memory_space<vmem>>, %arg6: memref<256x128xbf16, #tpu.memory_space<vmem>>, %arg7: memref<3x512xf32, #tpu.memory_space<vmem>>, %arg8: memref<128x128xf32, #tpu.memory_space<vmem>>, %arg9: memref<128x512xf32, #tpu.memory_space<vmem>>) attributes {dimension_semantics = [#tpu.dimension_semantics<parallel>, #tpu.dimension_semantics<arbitrary>], iteration_bounds = array<i64: 1, 3>, scalar_prefetch = 0 : i64, scratch_operands = 1 : i64, tpu.core_type = #tpu.core_type<tc>, window_params = [{transform_indices = @transform_0, window_bounds = array<i64: 128, 256>}, {transform_indices = @transform_1, window_bounds = array<i64: 256, 512>}, {pipeline_mode = #tpu.pipeline_mode<synchronous>, transform_indices = @transform_2, window_bounds = array<i64: 256, 128>}, {pipeline_mode = #tpu.pipeline_mode<synchronous>, transform_indices = @transform_3, window_bounds = array<i64: 256, 128>}, {pipeline_mode = #tpu.pipeline_mode<synchronous>, transform_indices = @transform_4, window_bounds = array<i64: 256, 128>}, {pipeline_mode = #tpu.pipeline_mode<synchronous>, transform_indices = @transform_5, window_bounds = array<i64: 3, 512>}, {transform_indices = @transform_6, window_bounds = array<i64: 128, 128>}]} {
    %c0_i32 = arith.constant 0 : i32
    %0 = arith.cmpi eq, %arg1, %c0_i32 : i32
    %1 = arith.extui %0 : i1 to i32
    %c0_i32_0 = arith.constant 0 : i32
    %2 = arith.cmpi ne, %1, %c0_i32_0 : i32
    scf.if %2 {
      %cst_9 = arith.constant 0.000000e+00 : f32
      %12 = vector.broadcast %cst_9 : f32 to vector<128x512xf32>
      %c0_10 = arith.constant 0 : index
      %c0_11 = arith.constant 0 : index
      %13 = vector.load %arg9[%c0_10, %c0_11] : memref<128x512xf32, #tpu.memory_space<vmem>>, vector<128x512xf32>
      tpu.vector_store %arg9[%c0_10, %c0_11], %12 {strides = array<i32>} : memref<128x512xf32, #tpu.memory_space<vmem>>, vector<128x512xf32>,
    } else {
    }
    %c0 = arith.constant 0 : index
    %c0_1 = arith.constant 0 : index
    %3 = vector.load %arg9[%c0, %c0_1] : memref<128x512xf32, #tpu.memory_space<vmem>>, vector<128x512xf32>
    %c0_2 = arith.constant 0 : index
    %c0_3 = arith.constant 0 : index
    %4 = vector.load %arg2[%c0_2, %c0_3] : memref<128x256xbf16, #tpu.memory_space<vmem>>, vector<128x256xbf16>
    %c0_4 = arith.constant 0 : index
    %c0_5 = arith.constant 0 : index
    %5 = vector.load %arg3[%c0_4, %c0_5] : memref<256x512xbf16, #tpu.memory_space<vmem>>, vector<256x512xbf16>
    %cst = arith.constant dense<0.000000e+00> : vector<128x512xf32>
    %6 = tpu.matmul %4, %5, %cst {dimension_numbers = #tpu.dot_dimension_numbers<[1], [0], [0], [1], [0, 0, 1, 1], [], []>} : vector<128x256xbf16>, vector<256x512xbf16>, vector<128x512xf32> -> vector<128x512xf32>
    %7 = arith.addf %3, %6 : vector<128x512xf32>
    %c0_6 = arith.constant 0 : index
    %c0_7 = arith.constant 0 : index
    %8 = vector.load %arg9[%c0_6, %c0_7] : memref<128x512xf32, #tpu.memory_space<vmem>>, vector<128x512xf32>
    tpu.vector_store %arg9[%c0_6, %c0_7], %7 {strides = array<i32>} : memref<128x512xf32, #tpu.memory_space<vmem>>, vector<128x512xf32>,
    %c2_i32 = arith.constant 2 : i32
    %9 = arith.cmpi eq, %arg1, %c2_i32 : i32
    %10 = arith.extui %9 : i1 to i32
    %c0_i32_8 = arith.constant 0 : i32
    %11 = arith.cmpi ne, %10, %c0_i32_8 : i32
    scf.if %11 {
      %c0_9 = arith.constant 0 : index
      %c0_10 = arith.constant 0 : index
      %12 = vector.load %arg7[%c0_9, %c0_10] : memref<3x512xf32, #tpu.memory_space<vmem>>, vector<3x512xf32>
      %13 = vector.extract_strided_slice %12 {offsets = [0, 0], sizes = [1, 512], strides = [1, 1]} : vector<3x512xf32> to vector<1x512xf32>
      %14 = vector.shape_cast %13 : vector<1x512xf32> to vector<512xf32>
      %15 = vector.extract_strided_slice %12 {offsets = [1, 0], sizes = [1, 256], strides = [1, 1]} : vector<3x512xf32> to vector<1x256xf32>
      %16 = vector.shape_cast %15 : vector<1x256xf32> to vector<256xf32>
      %17 = vector.extract_strided_slice %12 {offsets = [2, 0], sizes = [1, 128], strides = [1, 1]} : vector<3x512xf32> to vector<1x128xf32>
      %18 = vector.shape_cast %17 : vector<1x128xf32> to vector<128xf32>
      %c0_11 = arith.constant 0 : index
      %c0_12 = arith.constant 0 : index
      %19 = vector.load %arg9[%c0_11, %c0_12] : memref<128x512xf32, #tpu.memory_space<vmem>>, vector<128x512xf32>
      %20 = vector.shape_cast %14 : vector<512xf32> to vector<1x512xf32>
      %21 = vector.broadcast %20 : vector<1x512xf32> to vector<128x512xf32>
      %22 = arith.addf %19, %21 : vector<128x512xf32>
      %cst_13 = arith.constant 0.000000e+00 : f32
      %23 = vector.broadcast %cst_13 : f32 to vector<128x512xf32>
      %24 = arith.maximumf %22, %23 : vector<128x512xf32>
      %25 = vector.extract_strided_slice %24 {offsets = [0, 0], sizes = [128, 256], strides = [1, 1]} : vector<128x512xf32> to vector<128x256xf32>
      %26 = arith.truncf %25 : vector<128x256xf32> to vector<128x256xbf16>
      %27 = vector.extract_strided_slice %24 {offsets = [0, 256], sizes = [128, 256], strides = [1, 1]} : vector<128x512xf32> to vector<128x256xf32>
      %28 = arith.truncf %27 : vector<128x256xf32> to vector<128x256xbf16>
      %c0_14 = arith.constant 0 : index
      %c0_15 = arith.constant 0 : index
      %29 = vector.load %arg4[%c0_14, %c0_15] : memref<256x128xbf16, #tpu.memory_space<vmem>>, vector<256x128xbf16>
      %cst_16 = arith.constant dense<0.000000e+00> : vector<128x128xf32>
      %30 = tpu.matmul %26, %29, %cst_16 {dimension_numbers = #tpu.dot_dimension_numbers<[1], [0], [0], [1], [0, 0, 1, 1], [], []>} : vector<128x256xbf16>, vector<256x128xbf16>, vector<128x128xf32> -> vector<128x128xf32>
      %31 = vector.extract_strided_slice %16 {offsets = [0], sizes = [128], strides = [1]} : vector<256xf32> to vector<128xf32>
      %32 = vector.shape_cast %31 : vector<128xf32> to vector<1x128xf32>
      %33 = vector.broadcast %32 : vector<1x128xf32> to vector<128x128xf32>
      %34 = arith.addf %30, %33 : vector<128x128xf32>
      %cst_17 = arith.constant 0.000000e+00 : f32
      %35 = vector.broadcast %cst_17 : f32 to vector<128x128xf32>
      %36 = arith.maximumf %34, %35 : vector<128x128xf32>
      %c0_18 = arith.constant 0 : index
      %c0_19 = arith.constant 0 : index
      %37 = vector.load %arg5[%c0_18, %c0_19] : memref<256x128xbf16, #tpu.memory_space<vmem>>, vector<256x128xbf16>
      %cst_20 = arith.constant dense<0.000000e+00> : vector<128x128xf32>
      %38 = tpu.matmul %28, %37, %cst_20 {dimension_numbers = #tpu.dot_dimension_numbers<[1], [0], [0], [1], [0, 0, 1, 1], [], []>} : vector<128x256xbf16>, vector<256x128xbf16>, vector<128x128xf32> -> vector<128x128xf32>
      %39 = vector.extract_strided_slice %16 {offsets = [128], sizes = [128], strides = [1]} : vector<256xf32> to vector<128xf32>
      %40 = vector.shape_cast %39 : vector<128xf32> to vector<1x128xf32>
      %41 = vector.broadcast %40 : vector<1x128xf32> to vector<128x128xf32>
      %42 = arith.addf %38, %41 : vector<128x128xf32>
      %cst_21 = arith.constant 0.000000e+00 : f32
      %43 = vector.broadcast %cst_21 : f32 to vector<128x128xf32>
      %44 = arith.maximumf %42, %43 : vector<128x128xf32>
      %45 = tpu.concatenate %36, %44 in 1 : vector<128x128xf32>, vector<128x128xf32> -> vector<128x256xf32>
      %46 = arith.truncf %45 : vector<128x256xf32> to vector<128x256xbf16>
      %c0_22 = arith.constant 0 : index
      %c0_23 = arith.constant 0 : index
      %47 = vector.load %arg6[%c0_22, %c0_23] : memref<256x128xbf16, #tpu.memory_space<vmem>>, vector<256x128xbf16>
      %cst_24 = arith.constant dense<0.000000e+00> : vector<128x128xf32>
      %48 = tpu.matmul %46, %47, %cst_24 {dimension_numbers = #tpu.dot_dimension_numbers<[1], [0], [0], [1], [0, 0, 1, 1], [], []>} : vector<128x256xbf16>, vector<256x128xbf16>, vector<128x128xf32> -> vector<128x128xf32>
      %49 = vector.shape_cast %18 : vector<128xf32> to vector<1x128xf32>
      %50 = vector.broadcast %49 : vector<1x128xf32> to vector<128x128xf32>
      %51 = arith.addf %48, %50 : vector<128x128xf32>
      %52 = tpu.iota {dimensions = array<i32: 1>} : vector<128x128xi32>
      %c4_i32 = arith.constant 4 : i32
      %53 = vector.broadcast %c4_i32 : i32 to vector<128x128xi32>
      %54 = arith.cmpi slt, %52, %53 : vector<128x128xi32>
      %55 = arith.negf %51 : vector<128x128xf32>
      %56 = math.exp %55 : vector<128x128xf32>
      %cst_25 = arith.constant 1.000000e+00 : f32
      %57 = vector.broadcast %cst_25 : f32 to vector<128x128xf32>
      %58 = arith.addf %57, %56 : vector<128x128xf32>
      %59 = arith.divf %57, %58 : vector<128x128xf32>
      %60 = arith.select %54, %59, %51 : vector<128x128xi1>, vector<128x128xf32>
      %c0_26 = arith.constant 0 : index
      %c0_27 = arith.constant 0 : index
      %61 = vector.load %arg8[%c0_26, %c0_27] : memref<128x128xf32, #tpu.memory_space<vmem>>, vector<128x128xf32>
      tpu.vector_store %arg8[%c0_26, %c0_27], %60 {strides = array<i32>} : memref<128x128xf32, #tpu.memory_space<vmem>>, vector<128x128xf32>,
    } else {
    }
    return
  }
  func.func @transform_0(%arg0: i32, %arg1: i32) -> (i32, i32) {
    %c0_i32 = arith.constant 0 : i32
    return %arg0, %arg1 : i32, i32
  }
  func.func @transform_1(%arg0: i32, %arg1: i32) -> (i32, i32) {
    %c0_i32 = arith.constant 0 : i32
    %c0_i32_0 = arith.constant 0 : i32
    return %arg1, %c0_i32 : i32, i32
  }
  func.func @transform_2(%arg0: i32, %arg1: i32) -> (i32, i32) {
    %c0_i32 = arith.constant 0 : i32
    %c0_i32_0 = arith.constant 0 : i32
    %c0_i32_1 = arith.constant 0 : i32
    return %c0_i32, %c0_i32_0 : i32, i32
  }
  func.func @transform_3(%arg0: i32, %arg1: i32) -> (i32, i32) {
    %c0_i32 = arith.constant 0 : i32
    %c0_i32_0 = arith.constant 0 : i32
    %c0_i32_1 = arith.constant 0 : i32
    return %c0_i32, %c0_i32_0 : i32, i32
  }
  func.func @transform_4(%arg0: i32, %arg1: i32) -> (i32, i32) {
    %c0_i32 = arith.constant 0 : i32
    %c0_i32_0 = arith.constant 0 : i32
    %c0_i32_1 = arith.constant 0 : i32
    return %c0_i32, %c0_i32_0 : i32, i32
  }
  func.func @transform_5(%arg0: i32, %arg1: i32) -> (i32, i32) {
    %c0_i32 = arith.constant 0 : i32
    %c0_i32_0 = arith.constant 0 : i32
    %c0_i32_1 = arith.constant 0 : i32
    return %c0_i32, %c0_i32_0 : i32, i32
  }
  func.func @transform_6(%arg0: i32, %arg1: i32) -> (i32, i32) {
    %c0_i32 = arith.constant 0 : i32
    %c0_i32_0 = arith.constant 0 : i32
    return %arg0, %c0_i32 : i32, i32
  }
}

</mosaic_0001>

<llo_original>
// kernel: momi_forward.1
$region0: #{momi_forward.1}
  #allocation0 [shape = 'u32[]', space=smem, size = 0x4, offset = 0x4, fixed_abs, tag = 'smem constant byte address 0x4 - core index']
  #allocation1 [shape = 'u32[72,128]{1,0:T(1,128)}', space=vmem, size = 0x9000, scoped, tag = 'internal scratch']
  #allocation2 [shape = 'f32[128,512]{1,0:T(8,128)}', space=vmem, size = 0x40000, scoped, tag = 'scratch operand']
  %s0 = inlined_call_operand.vmem [shape: bf16[128,768], index: 0, kind: input, shape index: {}]
  %s1 = inlined_call_operand.vmem [shape: bf16[768,512], index: 1, kind: input, shape index: {}]
  %s2 = inlined_call_operand.vmem [shape: bf16[256,128], index: 2, kind: input, shape index: {}]
  %s3 = inlined_call_operand.vmem [shape: bf16[256,128], index: 3, kind: input, shape index: {}]
  %s4 = inlined_call_operand.vmem [shape: bf16[256,128], index: 4, kind: input, shape index: {}]
  %s5 = inlined_call_operand.vmem [shape: f32[3,512], index: 5, kind: input, shape index: {}]
  %s6 = inlined_call_operand.vmem [shape: f32[128,128], index: 6, kind: output, shape index: {}]
  %s7 = sld [smem:[#allocation0]]
  $region103: #{momi_forward.1} parent=0
    _
  %s9 = ssub.s32 1, %s7
  %s10 = scalar_select 0, %s9, %s7
  $region1: #{momi_forward.1} parent=0
    #allocation3 [shape = 'u8[131072]{0}', space=vmem, size = 0x20000, scoped, tag = 'input window, operand 0']
    loop: start=0, step=1, limit=5
    $region2: #{momi_forward.1} parent=1 // loop_pre_header
      _
    $region3: #{momi_forward.1} parent=1 // loop_header
      %s12 = sphi 0, %s16
      %p13 = scmp.ge.s32.totalorder %s12, 5
      %s19 = sphi 0, %s31
      %s20 = sphi 0, %s27
      %s21 = sphi 0, %s19
      %s22 = sphi 0, %s20
      %s23 = sphi 0, %s21
      %s24 = sphi 0, %s22
      %s36 = sphi 0, %s38
      %s39 = sphi 0, %s36
      %s40 = sphi 0, %s39
      %s56 = sphi 0, %s40
      %s62 = sphi 0, %s64
      %s65 = sphi 0, %s62
      %s66 = sphi 0, %s65
      %s82 = sphi 0, %s66
      %s86 = sphi 0, %s86
      %s88 = sphi 0, %s86
      %s89 = sphi 0, %s88
      %s103 = sphi 0, %s89
      %s107 = sphi 0, %s107
      %s109 = sphi 0, %s107
      %s110 = sphi 0, %s109
      %s124 = sphi 0, %s110
      %s128 = sphi 0, %s128
      %s130 = sphi 0, %s128
      %s131 = sphi 0, %s130
      %s145 = sphi 0, %s131
      %s149 = sphi 0, %s149
      %s151 = sphi 0, %s149
      %s152 = sphi 0, %s151
      %s166 = sphi 0, %s152
      %s172 = sphi 0, %s174
      %s175 = sphi 0, %s172
      %s176 = sphi 0, %s175
      %s192 = sphi 0, %s176
    $region4: #{momi_forward.1} parent=1 // loop_header_branch
      %15 = sbr.rel (%p13) target = $region8
    $region5: #{momi_forward.1} parent=1 // loop_body
      %s17 = ssub.s32 %s12, 1
      %s18 = ssub.s32 %s12, 2
      %s25 = sadd.s32 1, %s20
      %p26 = scmp.ge.s32.totalorder %s25, 3
      %s27 = scalar_select %p26, 0, %s25
      %s28 = sadd.s32 1, %s19
      %s29 = scalar_select %p26, %s28, %s19
      %p30 = scmp.ge.s32.totalorder %s29, 1
      %s31 = scalar_select %p30, 0, %s29
      %s32 = ssub.s32 %s19, %s31
      %s33 = ssub.s32 %s20, %s27
      %s34 = sor.u32 %s32, %s33
      %p35 = scmp.eq.s32.totalorder %s34, 0
      %s37 = sadd.s32 %s36, 1
      %s38 = scalar_select %p35, %s36, %s37
      %p41 = pneg %p35
      %p42 = scmp.eq.s32.totalorder %s12, 2
      %p43 = por %p41, %p42
      %p44 = scmp.ne.s32.totalorder %s36, %s39
      %p45 = scmp.eq.s32.totalorder %s12, 0
      %p46 = por %p44, %p45
      %p47 = scmp.ne.s32.totalorder %s36, %s39
      %p48 = scmp.eq.s32.totalorder %s17, 2
      %p49 = por %p47, %p48
      %p50 = scmp.ne.s32.totalorder %s39, %s40
      %p51 = scmp.eq.s32.totalorder %s17, 0
      %p52 = por %p50, %p51
      %p53 = scmp.ne.s32.totalorder %s39, %s40
      %p54 = scmp.eq.s32.totalorder %s18, 2
      %p55 = por %p53, %p54
      %p57 = scmp.ne.s32.totalorder %s40, %s56
      %p58 = scmp.eq.s32.totalorder %s18, 0
      %p59 = por %p57, %p58
      %s60 = ssub.s32 %s20, %s27
      %p61 = scmp.eq.s32.totalorder %s60, 0
      %s63 = sadd.s32 %s62, 1
      %s64 = scalar_select %p61, %s62, %s63
      %p67 = pneg %p61
      %p68 = scmp.eq.s32.totalorder %s12, 2
      %p69 = por %p67, %p68
      %p70 = scmp.ne.s32.totalorder %s62, %s65
      %p71 = scmp.eq.s32.totalorder %s12, 0
      %p72 = por %p70, %p71
      %p73 = scmp.ne.s32.totalorder %s62, %s65
      %p74 = scmp.eq.s32.totalorder %s17, 2
      %p75 = por %p73, %p74
      %p76 = scmp.ne.s32.totalorder %s65, %s66
      %p77 = scmp.eq.s32.totalorder %s17, 0
      %p78 = por %p76, %p77
      %p79 = scmp.ne.s32.totalorder %s65, %s66
      %p80 = scmp.eq.s32.totalorder %s18, 2
      %p81 = por %p79, %p80
      %p83 = scmp.ne.s32.totalorder %s66, %s82
      %p84 = scmp.eq.s32.totalorder %s18, 0
      %p85 = por %p83, %p84
      %s87 = sadd.s32 %s86, 1
      %p90 = scmp.eq.s32.totalorder %s12, 2
      %p91 = scmp.ne.s32.totalorder %s86, %s88
      %p92 = scmp.eq.s32.totalorder %s12, 0
      %p93 = por %p91, %p92
      %p94 = scmp.ne.s32.totalorder %s86, %s88
      %p95 = scmp.eq.s32.totalorder %s17, 2
      %p96 = por %p94, %p95
      %p97 = scmp.ne.s32.totalorder %s88, %s89
      %p98 = scmp.eq.s32.totalorder %s17, 0
      %p99 = por %p97, %p98
      %p100 = scmp.ne.s32.totalorder %s88, %s89
      %p101 = scmp.eq.s32.totalorder %s18, 2
      %p102 = por %p100, %p101
      %p104 = scmp.ne.s32.totalorder %s89, %s103
      %p105 = scmp.eq.s32.totalorder %s18, 0
      %p106 = por %p104, %p105
      %s108 = sadd.s32 %s107, 1
      %p111 = scmp.eq.s32.totalorder %s12, 2
      %p112 = scmp.ne.s32.totalorder %s107, %s109
      %p113 = scmp.eq.s32.totalorder %s12, 0
      %p114 = por %p112, %p113
      %p115 = scmp.ne.s32.totalorder %s107, %s109
      %p116 = scmp.eq.s32.totalorder %s17, 2
      %p117 = por %p115, %p116
      %p118 = scmp.ne.s32.totalorder %s109, %s110
      %p119 = scmp.eq.s32.totalorder %s17, 0
      %p120 = por %p118, %p119
      %p121 = scmp.ne.s32.totalorder %s109, %s110
      %p122 = scmp.eq.s32.totalorder %s18, 2
      %p123 = por %p121, %p122
      %p125 = scmp.ne.s32.totalorder %s110, %s124
      %p126 = scmp.eq.s32.totalorder %s18, 0
      %p127 = por %p125, %p126
      %s129 = sadd.s32 %s128, 1
      %p132 = scmp.eq.s32.totalorder %s12, 2
      %p133 = scmp.ne.s32.totalorder %s128, %s130
      %p134 = scmp.eq.s32.totalorder %s12, 0
      %p135 = por %p133, %p134
      %p136 = scmp.ne.s32.totalorder %s128, %s130
      %p137 = scmp.eq.s32.totalorder %s17, 2
      %p138 = por %p136, %p137
      %p139 = scmp.ne.s32.totalorder %s130, %s131
      %p140 = scmp.eq.s32.totalorder %s17, 0
      %p141 = por %p139, %p140
      %p142 = scmp.ne.s32.totalorder %s130, %s131
      %p143 = scmp.eq.s32.totalorder %s18, 2
      %p144 = por %p142, %p143
      %p146 = scmp.ne.s32.totalorder %s131, %s145
      %p147 = scmp.eq.s32.totalorder %s18, 0
      %p148 = por %p146, %p147
      %s150 = sadd.s32 %s149, 1
      %p153 = scmp.eq.s32.totalorder %s12, 2
      %p154 = scmp.ne.s32.totalorder %s149, %s151
      %p155 = scmp.eq.s32.totalorder %s12, 0
      %p156 = por %p154, %p155
      %p157 = scmp.ne.s32.totalorder %s149, %s151
      %p158 = scmp.eq.s32.totalorder %s17, 2
      %p159 = por %p157, %p158
      %p160 = scmp.ne.s32.totalorder %s151, %s152
      %p161 = scmp.eq.s32.totalorder %s17, 0
      %p162 = por %p160, %p161
      %p163 = scmp.ne.s32.totalorder %s151, %s152
      %p164 = scmp.eq.s32.totalorder %s18, 2
      %p165 = por %p163, %p164
      %p167 = scmp.ne.s32.totalorder %s152, %s166
      %p168 = scmp.eq.s32.totalorder %s18, 0
      %p169 = por %p167, %p168
      %s170 = ssub.s32 %s19, %s31
      %p171 = scmp.eq.s32.totalorder %s170, 0
      %s173 = sadd.s32 %s172, 1
      %s174 = scalar_select %p171, %s172, %s173
      %p177 = pneg %p171
      %p178 = scmp.eq.s32.totalorder %s12, 2
      %p179 = por %p177, %p178
      %p180 = scmp.ne.s32.totalorder %s172, %s175
      %p181 = scmp.eq.s32.totalorder %s12, 0
      %p182 = por %p180, %p181
      %p183 = scmp.ne.s32.totalorder %s172, %s175
      %p184 = scmp.eq.s32.totalorder %s17, 2
      %p185 = por %p183, %p184
      %p186 = scmp.ne.s32.totalorder %s175, %s176
      %p187 = scmp.eq.s32.totalorder %s17, 0
      %p188 = por %p186, %p187
      %p189 = scmp.ne.s32.totalorder %s175, %s176
      %p190 = scmp.eq.s32.totalorder %s18, 2
      %p191 = por %p189, %p190
      %p193 = scmp.ne.s32.totalorder %s176, %s192
      %p194 = scmp.eq.s32.totalorder %s18, 0
      %p195 = por %p193, %p194
      %p196 = scmp.le.s32.totalorder 1, %s12
      %p197 = scmp.lt.s32.totalorder %s12, 4
      %p198 = pnand %p196, %p197
      %p199 = pneg %p198
      // Predicated region
      $region9: #{momi_forward.1} parent=5 // pred_check
        _
      $region10: #{momi_forward.1} parent=5 // pred_check_branch
        %201 = sbr.rel (%p198) target = $region12
      $region11: #{momi_forward.1} parent=5 // pred_region
        %s202 = ssub.s32 %s12, 1
        // Predicated region
        $region13: #{momi_forward.1} parent=11 // pred_check
          %p203 = pneg %p99
        $region14: #{momi_forward.1} parent=11 // pred_check_branch
          %205 = sbr.rel (%p203) target = $region16
        $region15: #{momi_forward.1} parent=11 // pred_region
          _
        $region16: #{momi_forward.1} parent=11 // pred_fallthru
          _
        // Predicated region
        $region17: #{momi_forward.1} parent=11 // pred_check
          %p206 = pneg %p120
        $region18: #{momi_forward.1} parent=11 // pred_check_branch
          %208 = sbr.rel (%p206) target = $region20
        $region19: #{momi_forward.1} parent=11 // pred_region
          _
        $region20: #{momi_forward.1} parent=11 // pred_fallthru
          _
        // Predicated region
        $region21: #{momi_forward.1} parent=11 // pred_check
          %p209 = pneg %p141
        $region22: #{momi_forward.1} parent=11 // pred_check_branch
          %211 = sbr.rel (%p209) target = $region24
        $region23: #{momi_forward.1} parent=11 // pred_region
          _
        $region24: #{momi_forward.1} parent=11 // pred_fallthru
          _
        // Predicated region
        $region25: #{momi_forward.1} parent=11 // pred_check
          %p212 = pneg %p162
        $region26: #{momi_forward.1} parent=11 // pred_check_branch
          %214 = sbr.rel (%p212) target = $region28
        $region27: #{momi_forward.1} parent=11 // pred_region
          _
        $region28: #{momi_forward.1} parent=11 // pred_fallthru
          _
      $region12: #{momi_forward.1} parent=5 // pred_fallthru
        _
      %p215 = scmp.lt.s32.totalorder %s12, 3
      // Predicated region
      $region29: #{momi_forward.1} parent=5 // pred_check
        %p216 = pneg %p215
      $region30: #{momi_forward.1} parent=5 // pred_check_branch
        %218 = sbr.rel (%p216) target = $region32
      $region31: #{momi_forward.1} parent=5 // pred_region
        // Predicated region
        $region33: #{momi_forward.1} parent=31 // pred_check
          %p219 = pneg %p46
        $region34: #{momi_forward.1} parent=31 // pred_check_branch
          %221 = sbr.rel (%p219) target = $region36
        $region35: #{momi_forward.1} parent=31 // pred_region
          %s222 = sand.u32 %s36, 1
          %s223 = sand.u32 %s36, 1
          %s224 = smul.addr %s223, 128
          %s225 = scalar_lea.vmem [#allocation3], %s224
          %s226 = smul.u32 16, %s19
          %s227 = smul.u32 2, %s20
          %s228 = smul.addr %s226, 6
          %s229 = sadd.s32 %s227, %s228
          %s230 = smul.addr %s229, 4
          %s231 = scalar_lea.vmem %s0, %s230
          // Predicated region
          $region37: #{momi_forward.1} parent=35 // pred_check
            _
          $region38: #{momi_forward.1} parent=35 // pred_check_branch
            %233 = sbr.rel (0) target = $region40
          $region39: #{momi_forward.1} parent=35 // pred_region
            // Predicated region
            $region41: #{momi_forward.1} parent=39 // pred_check
              _
            $region42: #{momi_forward.1} parent=39 // pred_check_branch
              %235 = sbr.rel (0) target = $region44
            $region43: #{momi_forward.1} parent=39 // pred_region
              // Predicated region
              $region56: #{momi_forward.1} parent=43 // pred_check
                _
              $region57: #{momi_forward.1} parent=43 // pred_check_branch
                %281 = sbr.rel (0) target = $region59
              $region58: #{momi_forward.1} parent=43 // pred_region
                loop: start=0, step=1, limit=1
                $region60: #{momi_forward.1} parent=58 // loop_pre_header
                  _
                $region61: #{momi_forward.1} parent=58 // loop_header
                  %s283 = sphi 0, %s287
                  %p284 = scmp.ge.s32.totalorder %s283, 1
                  %s288 = sphi %s231, %s231
                  %s289 = sphi %s225, %s225
                $region62: #{momi_forward.1} parent=58 // loop_header_branch
                  %286 = sbr.rel (%p284) target = $region66
                $region63: #{momi_forward.1} parent=58 // loop_body
                  %v290 = vld [vmem:[%s288] sm:$0xff]
                  %291 = vst [vmem:[%s289] sm:$0xff] %v290
                  %v292 = vld [vmem:[%s288 + $0x18] sm:$0xff]
                  %293 = vst [vmem:[%s289 + $0x8] sm:$0xff] %v292
                  %v294 = vld [vmem:[%s288 + $0x30] sm:$0xff]
                  %295 = vst [vmem:[%s289 + $0x10] sm:$0xff] %v294
                  %v296 = vld [vmem:[%s288 + $0x48] sm:$0xff]
                  %297 = vst [vmem:[%s289 + $0x18] sm:$0xff] %v296
                  %v298 = vld [vmem:[%s288 + $0x60] sm:$0xff]
                  %299 = vst [vmem:[%s289 + $0x20] sm:$0xff] %v298
                  %v300 = vld [vmem:[%s288 + $0x78] sm:$0xff]
                  %301 = vst [vmem:[%s289 + $0x28] sm:$0xff] %v300
                  %v302 = vld [vmem:[%s288 + $0x90] sm:$0xff]
                  %303 = vst [vmem:[%s289 + $0x30] sm:$0xff] %v302
                  %v304 = vld [vmem:[%s288 + $0xa8] sm:$0xff]
                  %305 = vst [vmem:[%s289 + $0x38] sm:$0xff] %v304
                  %v306 = vld [vmem:[%s288 + $0xc0] sm:$0xff]
                  %307 = vst [vmem:[%s289 + $0x40] sm:$0xff] %v306
                  %v308 = vld [vmem:[%s288 + $0xd8] sm:$0xff]
                  %309 = vst [vmem:[%s289 + $0x48] sm:$0xff] %v308
                  %v310 = vld [vmem:[%s288 + $0xf0] sm:$0xff]
                  %311 = vst [vmem:[%s289 + $0x50] sm:$0xff] %v310
                  %v312 = vld [vmem:[%s288 + $0x108] sm:$0xff]
                  %313 = vst [vmem:[%s289 + $0x58] sm:$0xff] %v312
                  %v314 = vld [vmem:[%s288 + $0x120] sm:$0xff]
                  %315 = vst [vmem:[%s289 + $0x60] sm:$0xff] %v314
                  %v316 = vld [vmem:[%s288 + $0x138] sm:$0xff]
                  %317 = vst [vmem:[%s289 + $0x68] sm:$0xff] %v316
                  %v318 = vld [vmem:[%s288 + $0x150] sm:$0xff]
                  %319 = vst [vmem:[%s289 + $0x70] sm:$0xff] %v318
                  %v320 = vld [vmem:[%s288 + $0x168] sm:$0xff]
                  %321 = vst [vmem:[%s289 + $0x78] sm:$0xff] %v320
                $region64: #{momi_forward.1} parent=58 // loop_footer
                  %s287 = sadd.s32 1, %s283
                $region65: #{momi_forward.1} parent=58 // loop_footer_branch
                  %282 = sbr.rel target = $region61
                $region66: #{momi_forward.1} parent=58 // loop_exit
                  _
              $region59: #{momi_forward.1} parent=43 // pred_fallthru
                _
              // Predicated region
              $region67: #{momi_forward.1} parent=43 // pred_check
                _
              $region68: #{momi_forward.1} parent=43 // pred_check_branch
                %323 = sbr.rel target = $region70
              $region69: #{momi_forward.1} parent=43 // pred_region
                _
              $region70: #{momi_forward.1} parent=43 // pred_fallthru
                _
            $region44: #{momi_forward.1} parent=39 // pred_fallthru
              _
            // Predicated region
            $region45: #{momi_forward.1} parent=39 // pred_check
              _
            $region46: #{momi_forward.1} parent=39 // pred_check_branch
              %237 = sbr.rel target = $region48
            $region47: #{momi_forward.1} parent=39 // pred_region
              %s239 = ssub.s32 256, 1
              loop: start=0, step=1, limit=1
              $region49: #{momi_forward.1} parent=47 // loop_pre_header
                _
              $region50: #{momi_forward.1} parent=47 // loop_header
                %s241 = sphi 0, %s245
                %p242 = scmp.ge.s32.totalorder %s241, 1
                %s246 = sphi %s231, %s231
                %s247 = sphi %s225, %s225
              $region51: #{momi_forward.1} parent=47 // loop_header_branch
                %244 = sbr.rel (%p242) target = $region55
              $region52: #{momi_forward.1} parent=47 // loop_body
                %v248 = vld [vmem:[%s246] sm:%s239]
                %249 = vst [vmem:[%s247] sm:%s239] %v248
                %v250 = vld [vmem:[%s246 + $0x18] sm:%s239]
                %251 = vst [vmem:[%s247 + $0x8] sm:%s239] %v250
                %v252 = vld [vmem:[%s246 + $0x30] sm:%s239]
                %253 = vst [vmem:[%s247 + $0x10] sm:%s239] %v252
                %v254 = vld [vmem:[%s246 + $0x48] sm:%s239]
                %255 = vst [vmem:[%s247 + $0x18] sm:%s239] %v254
                %v256 = vld [vmem:[%s246 + $0x60] sm:%s239]
                %257 = vst [vmem:[%s247 + $0x20] sm:%s239] %v256
                %v258 = vld [vmem:[%s246 + $0x78] sm:%s239]
                %259 = vst [vmem:[%s247 + $0x28] sm:%s239] %v258
                %v260 = vld [vmem:[%s246 + $0x90] sm:%s239]
                %261 = vst [vmem:[%s247 + $0x30] sm:%s239] %v260
                %v262 = vld [vmem:[%s246 + $0xa8] sm:%s239]
                %263 = vst [vmem:[%s247 + $0x38] sm:%s239] %v262
                %v264 = vld [vmem:[%s246 + $0xc0] sm:%s239]
                %265 = vst [vmem:[%s247 + $0x40] sm:%s239] %v264
                %v266 = vld [vmem:[%s246 + $0xd8] sm:%s239]
                %267 = vst [vmem:[%s247 + $0x48] sm:%s239] %v266
                %v268 = vld [vmem:[%s246 + $0xf0] sm:%s239]
                %269 = vst [vmem:[%s247 + $0x50] sm:%s239] %v268
                %v270 = vld [vmem:[%s246 + $0x108] sm:%s239]
                %271 = vst [vmem:[%s247 + $0x58] sm:%s239] %v270
                %v272 = vld [vmem:[%s246 + $0x120] sm:%s239]
                %273 = vst [vmem:[%s247 + $0x60] sm:%s239] %v272
                %v274 = vld [vmem:[%s246 + $0x138] sm:%s239]
                %275 = vst [vmem:[%s247 + $0x68] sm:%s239] %v274
                %v276 = vld [vmem:[%s246 + $0x150] sm:%s239]
                %277 = vst [vmem:[%s247 + $0x70] sm:%s239] %v276
                %v278 = vld [vmem:[%s246 + $0x168] sm:%s239]
                %279 = vst [vmem:[%s247 + $0x78] sm:%s239] %v278
              $region53: #{momi_forward.1} parent=47 // loop_footer
                %s245 = sadd.s32 1, %s241
              $region54: #{momi_forward.1} parent=47 // loop_footer_branch
                %240 = sbr.rel target = $region50
              $region55: #{momi_forward.1} parent=47 // loop_exit
                _
            $region48: #{momi_forward.1} parent=39 // pred_fallthru
              _
          $region40: #{momi_forward.1} parent=35 // pred_fallthru
            _
          %324 = vnop
        $region36: #{momi_forward.1} parent=31 // pred_fallthru
          _
        // Predicated region
        $region71: #{momi_forward.1} parent=31 // pred_check
          %p325 = pneg %p72
        $region72: #{momi_forward.1} parent=31 // pred_check_branch
          %327 = sbr.rel (%p325) target = $region74
        $region73: #{momi_forward.1} parent=31 // pred_region
          %s328 = smul.u32 32, %s20
          %p329 = scmp.lt.s32.totalorder %s328, 95
          %s330 = scalar_select %p329, %s328, 95
          %s331 = smul.addr %s330, 4
          %s332 = smul.addr %s331, 4
          %s333 = scalar_lea.vmem %s1, %s332
          %s334 = smul.u32 32, %s20
        $region74: #{momi_forward.1} parent=31 // pred_fallthru
          _
      $region32: #{momi_forward.1} parent=5 // pred_fallthru
        _
      %p335 = scmp.le.s32.totalorder 1, %s12
      %p336 = scmp.lt.s32.totalorder %s12, 4
      %p337 = pnand %p335, %p336
      %p338 = pneg %p337
      // Predicated region
      $region75: #{momi_forward.1} parent=5 // pred_check
        _
      $region76: #{momi_forward.1} parent=5 // pred_check_branch
        %340 = sbr.rel (%p337) target = $region78
      $region77: #{momi_forward.1} parent=5 // pred_region
        %s341 = ssub.s32 %s12, 1
        %s342 = sand.u32 %s39, 1
        %s343 = sand.u32 %s39, 1
        %s344 = smul.addr %s343, 128
        %s345 = scalar_lea.vmem [#allocation3], %s344
        // Predicated region
        $region79: #{momi_forward.1} parent=77 // pred_check
          %p346 = pneg %p52
        $region80: #{momi_forward.1} parent=77 // pred_check_branch
          %348 = sbr.rel (%p346) target = $region82
        $region81: #{momi_forward.1} parent=77 // pred_region
          _
        $region82: #{momi_forward.1} parent=77 // pred_fallthru
          _
        %s349 = sand.u32 %s39, 1
        %s350 = sand.u32 %s39, 1
        %s351 = smul.addr %s350, 128
        %s352 = scalar_lea.vmem [#allocation3], %s351
        %p353 = pneg %p52
        %p354 = pneg %p49
        %s355 = smul.u32 32, %s22
        %p356 = scmp.lt.s32.totalorder %s355, 95
        %s357 = scalar_select %p356, %s355, 95
        %s358 = smul.addr %s357, 4
        %s359 = smul.addr %s358, 4
        %s360 = scalar_lea.vmem %s1, %s359
        %p361 = pneg %p78
        %p362 = pneg %p75
        %p363 = pneg %p99
        %p364 = pneg %p96
        %p365 = pneg %p120
        %p366 = pneg %p117
        %p367 = pneg %p141
        %p368 = pneg %p138
        %p369 = pneg %p162
        %p370 = pneg %p159
        %p371 = pneg %p188
        %p372 = pneg %p185
        %s373 = smul.u32 16, %s21
        %p374 = scmp.lt.s32.totalorder %s373, 15
        %s375 = scalar_select %p374, %s373, 15
        %s376 = smul.addr %s375, 8
        %s377 = scalar_lea.vmem %s6, %s376
        %s378 = smul.u32 16, %s21
        %s379 = smul.u32 2, %s22
        %s380 = smul.u32 32, %s22
        %p381 = scmp.lt.s32.totalorder %s380, 95
        %s382 = scalar_select %p381, %s380, 95
        %s383 = smul.addr %s382, 4
        %s384 = smul.addr %s383, 4
        %s385 = scalar_lea.vmem %s1, %s384
        %s386 = smul.u32 32, %s22
        %s387 = smul.u32 16, %s21
        %p388 = scmp.lt.s32.totalorder %s387, 15
        %s389 = scalar_select %p388, %s387, 15
        %s390 = smul.addr %s389, 8
        %s391 = scalar_lea.vmem %s6, %s390
        %s392 = smul.u32 16, %s21
        %p393 = scmp.eq.s32.totalorder %s22, 0
        // Predicated region
        $region83: #{momi_forward.1} parent=77 // pred_check
          %p394 = pneg %p393
        $region84: #{momi_forward.1} parent=77 // pred_check_branch
          %396 = sbr.rel (%p394) target = $region86
        $region85: #{momi_forward.1} parent=77 // pred_region
          %397 = vst [vmem:[#allocation2] sm:$0xff] 0.0
          %398 = vst [vmem:[#allocation2 + $0x8] sm:$0xff] 0.0
          %399 = vst [vmem:[#allocation2 + $0x10] sm:$0xff] 0.0
          %400 = vst [vmem:[#allocation2 + $0x18] sm:$0xff] 0.0
          %401 = vst [vmem:[#allocation2 + $0x20] sm:$0xff] 0.0
          %402 = vst [vmem:[#allocation2 + $0x28] sm:$0xff] 0.0
          %403 = vst [vmem:[#allocation2 + $0x30] sm:$0xff] 0.0
          %404 = vst [vmem:[#allocation2 + $0x38] sm:$0xff] 0.0
          %405 = vst [vmem:[#allocation2 + $0x40] sm:$0xff] 0.0
          %406 = vst [vmem:[#allocation2 + $0x48] sm:$0xff] 0.0
          %407 = vst [vmem:[#allocation2 + $0x50] sm:$0xff] 0.0
          %408 = vst [vmem:[#allocation2 + $0x58] sm:$0xff] 0.0
          %409 = vst [vmem:[#allocation2 + $0x60] sm:$0xff] 0.0
          %410 = vst [vmem:[#allocation2 + $0x68] sm:$0xff] 0.0
          %411 = vst [vmem:[#allocation2 + $0x70] sm:$0xff] 0.0
          %412 = vst [vmem:[#allocation2 + $0x78] sm:$0xff] 0.0
          %413 = vst [vmem:[#allocation2 + $0x80] sm:$0xff] 0.0
          %414 = vst [vmem:[#allocation2 + $0x88] sm:$0xff] 0.0
          %415 = vst [vmem:[#allocation2 + $0x90] sm:$0xff] 0.0
          %416 = vst [vmem:[#allocation2 + $0x98] sm:$0xff] 0.0
          %417 = vst [vmem:[#allocation2 + $0xa0] sm:$0xff] 0.0
          %418 = vst [vmem:[#allocation2 + $0xa8] sm:$0xff] 0.0
          %419 = vst [vmem:[#allocation2 + $0xb0] sm:$0xff] 0.0
          %420 = vst [vmem:[#allocation2 + $0xb8] sm:$0xff] 0.0
          %421 = vst [vmem:[#allocation2 + $0xc0] sm:$0xff] 0.0
          %422 = vst [vmem:[#allocation2 + $0xc8] sm:$0xff] 0.0
          %423 = vst [vmem:[#allocation2 + $0xd0] sm:$0xff] 0.0
          %424 = vst [vmem:[#allocation2 + $0xd8] sm:$0xff] 0.0
          %425 = vst [vmem:[#allocation2 + $0xe0] sm:$0xff] 0.0
          %426 = vst [vmem:[#allocation2 + $0xe8] sm:$0xff] 0.0
          %427 = vst [vmem:[#allocation2 + $0xf0] sm:$0xff] 0.0
          %428 = vst [vmem:[#allocation2 + $0xf8] sm:$0xff] 0.0
          %429 = vst [vmem:[#allocation2 + $0x100] sm:$0xff] 0.0
          %430 = vst [vmem:[#allocation2 + $0x108] sm:$0xff] 0.0
          %431 = vst [vmem:[#allocation2 + $0x110] sm:$0xff] 0.0
          %432 = vst [vmem:[#allocation2 + $0x118] sm:$0xff] 0.0
          %433 = vst [vmem:[#allocation2 + $0x120] sm:$0xff] 0.0
          %434 = vst [vmem:[#allocation2 + $0x128] sm:$0xff] 0.0
          %435 = vst [vmem:[#allocation2 + $0x130] sm:$0xff] 0.0
          %436 = vst [vmem:[#allocation2 + $0x138] sm:$0xff] 0.0
          %437 = vst [vmem:[#allocation2 + $0x140] sm:$0xff] 0.0
          %438 = vst [vmem:[#allocation2 + $0x148] sm:$0xff] 0.0
          %439 = vst [vmem:[#allocation2 + $0x150] sm:$0xff] 0.0
          %440 = vst [vmem:[#allocation2 + $0x158] sm:$0xff] 0.0
          %441 = vst [vmem:[#allocation2 + $0x160] sm:$0xff] 0.0
          %442 = vst [vmem:[#allocation2 + $0x168] sm:$0xff] 0.0
          %443 = vst [vmem:[#allocation2 + $0x170] sm:$0xff] 0.0
          %444 = vst [vmem:[#allocation2 + $0x178] sm:$0xff] 0.0
          %445 = vst [vmem:[#allocation2 + $0x180] sm:$0xff] 0.0
          %446 = vst [vmem:[#allocation2 + $0x188] sm:$0xff] 0.0
          %447 = vst [vmem:[#allocation2 + $0x190] sm:$0xff] 0.0
          %448 = vst [vmem:[#allocation2 + $0x198] sm:$0xff] 0.0
          %449 = vst [vmem:[#allocation2 + $0x1a0] sm:$0xff] 0.0
          %450 = vst [vmem:[#allocation2 + $0x1a8] sm:$0xff] 0.0
          %451 = vst [vmem:[#allocation2 + $0x1b0] sm:$0xff] 0.0
          %452 = vst [vmem:[#allocation2 + $0x1b8] sm:$0xff] 0.0
          %453 = vst [vmem:[#allocation2 + $0x1c0] sm:$0xff] 0.0
          %454 = vst [vmem:[#allocation2 + $0x1c8] sm:$0xff] 0.0
          %455 = vst [vmem:[#allocation2 + $0x1d0] sm:$0xff] 0.0
          %456 = vst [vmem:[#allocation2 + $0x1d8] sm:$0xff] 0.0
          %457 = vst [vmem:[#allocation2 + $0x1e0] sm:$0xff] 0.0
          %458 = vst [vmem:[#allocation2 + $0x1e8] sm:$0xff] 0.0
          %459 = vst [vmem:[#allocation2 + $0x1f0] sm:$0xff] 0.0
          %460 = vst [vmem:[#allocation2 + $0x1f8] sm:$0xff] 0.0
        $region86: #{momi_forward.1} parent=77 // pred_fallthru
          _
        %v461 = vld [vmem:[#allocation2] sm:$0xff]
        %v462 = vld [vmem:[#allocation2 + $0x8] sm:$0xff]
        %v463 = vld [vmem:[#allocation2 + $0x10] sm:$0xff]
        %v464 = vld [vmem:[#allocation2 + $0x18] sm:$0xff]
        %v465 = vld [vmem:[#allocation2 + $0x20] sm:$0xff]
        %v466 = vld [vmem:[#allocation2 + $0x28] sm:$0xff]
        %v467 = vld [vmem:[#allocation2 + $0x30] sm:$0xff]
        %v468 = vld [vmem:[#allocation2 + $0x38] sm:$0xff]
        %v469 = vld [vmem:[#allocation2 + $0x40] sm:$0xff]
        %v470 = vld [vmem:[#allocation2 + $0x48] sm:$0xff]
        %v471 = vld [vmem:[#allocation2 + $0x50] sm:$0xff]
        %v472 = vld [vmem:[#allocation2 + $0x58] sm:$0xff]
        %v473 = vld [vmem:[#allocation2 + $0x60] sm:$0xff]
        %v474 = vld [vmem:[#allocation2 + $0x68] sm:$0xff]
        %v475 = vld [vmem:[#allocation2 + $0x70] sm:$0xff]
        %v476 = vld [vmem:[#allocation2 + $0x78] sm:$0xff]
        %v477 = vld [vmem:[#allocation2 + $0x80] sm:$0xff]
        %v478 = vld [vmem:[#allocation2 + $0x88] sm:$0xff]
        %v479 = vld [vmem:[#allocation2 + $0x90] sm:$0xff]
        %v480 = vld [vmem:[#allocation2 + $0x98] sm:$0xff]
        %v481 = vld [vmem:[#allocation2 + $0xa0] sm:$0xff]
        %v482 = vld [vmem:[#allocation2 + $0xa8] sm:$0xff]
        %v483 = vld [vmem:[#allocation2 + $0xb0] sm:$0xff]
        %v484 = vld [vmem:[#allocation2 + $0xb8] sm:$0xff]
        %v485 = vld [vmem:[#allocation2 + $0xc0] sm:$0xff]
        %v486 = vld [vmem:[#allocation2 + $0xc8] sm:$0xff]
        %v487 = vld [vmem:[#allocation2 + $0xd0] sm:$0xff]
        %v488 = vld [vmem:[#allocation2 + $0xd8] sm:$0xff]
        %v489 = vld [vmem:[#allocation2 + $0xe0] sm:$0xff]
        %v490 = vld [vmem:[#allocation2 + $0xe8] sm:$0xff]
        %v491 = vld [vmem:[#allocation2 + $0xf0] sm:$0xff]
        %v492 = vld [vmem:[#allocation2 + $0xf8] sm:$0xff]
        %v493 = vld [vmem:[#allocation2 + $0x100] sm:$0xff]
        %v494 = vld [vmem:[#allocation2 + $0x108] sm:$0xff]
        %v495 = vld [vmem:[#allocation2 + $0x110] sm:$0xff]
        %v496 = vld [vmem:[#allocation2 + $0x118] sm:$0xff]
        %v497 = vld [vmem:[#allocation2 + $0x120] sm:$0xff]
        %v498 = vld [vmem:[#allocation2 + $0x128] sm:$0xff]
        %v499 = vld [vmem:[#allocation2 + $0x130] sm:$0xff]
        %v500 = vld [vmem:[#allocation2 + $0x138] sm:$0xff]
        %v501 = vld [vmem:[#allocation2 + $0x140] sm:$0xff]
        %v502 = vld [vmem:[#allocation2 + $0x148] sm:$0xff]
        %v503 = vld [vmem:[#allocation2 + $0x150] sm:$0xff]
        %v504 = vld [vmem:[#allocation2 + $0x158] sm:$0xff]
        %v505 = vld [vmem:[#allocation2 + $0x160] sm:$0xff]
        %v506 = vld [vmem:[#allocation2 + $0x168] sm:$0xff]
        %v507 = vld [vmem:[#allocation2 + $0x170] sm:$0xff]
        %v508 = vld [vmem:[#allocation2 + $0x178] sm:$0xff]
        %v509 = vld [vmem:[#allocation2 + $0x180] sm:$0xff]
        %v510 = vld [vmem:[#allocation2 + $0x188] sm:$0xff]
        %v511 = vld [vmem:[#allocation2 + $0x190] sm:$0xff]
        %v512 = vld [vmem:[#allocation2 + $0x198] sm:$0xff]
        %v513 = vld [vmem:[#allocation2 + $0x1a0] sm:$0xff]
        %v514 = vld [vmem:[#allocation2 + $0x1a8] sm:$0xff]
        %v515 = vld [vmem:[#allocation2 + $0x1b0] sm:$0xff]
        %v516 = vld [vmem:[#allocation2 + $0x1b8] sm:$0xff]
        %v517 = vld [vmem:[#allocation2 + $0x1c0] sm:$0xff]
        %v518 = vld [vmem:[#allocation2 + $0x1c8] sm:$0xff]
        %v519 = vld [vmem:[#allocation2 + $0x1d0] sm:$0xff]
        %v520 = vld [vmem:[#allocation2 + $0x1d8] sm:$0xff]
        %v521 = vld [vmem:[#allocation2 + $0x1e0] sm:$0xff]
        %v522 = vld [vmem:[#allocation2 + $0x1e8] sm:$0xff]
        %v523 = vld [vmem:[#allocation2 + $0x1f0] sm:$0xff]
        %v524 = vld [vmem:[#allocation2 + $0x1f8] sm:$0xff]
        %v525 = vld [vmem:[%s345] sm:$0xff]
        %v526 = vld [vmem:[%s345 + $0x8] sm:$0xff]
        %v527 = vld [vmem:[%s345 + $0x10] sm:$0xff]
        %v528 = vld [vmem:[%s345 + $0x18] sm:$0xff]
        %v529 = vld [vmem:[%s345 + $0x20] sm:$0xff]
        %v530 = vld [vmem:[%s345 + $0x28] sm:$0xff]
        %v531 = vld [vmem:[%s345 + $0x30] sm:$0xff]
        %v532 = vld [vmem:[%s345 + $0x38] sm:$0xff]
        %v533 = vld [vmem:[%s345 + $0x40] sm:$0xff]
        %v534 = vld [vmem:[%s345 + $0x48] sm:$0xff]
        %v535 = vld [vmem:[%s345 + $0x50] sm:$0xff]
        %v536 = vld [vmem:[%s345 + $0x58] sm:$0xff]
        %v537 = vld [vmem:[%s345 + $0x60] sm:$0xff]
        %v538 = vld [vmem:[%s345 + $0x68] sm:$0xff]
        %v539 = vld [vmem:[%s345 + $0x70] sm:$0xff]
        %v540 = vld [vmem:[%s345 + $0x78] sm:$0xff]
        %v541 = vld [vmem:[%s385] sm:$0xff]
        %v542 = vld [vmem:[%s385 + $0x8] sm:$0xff]
        %v543 = vld [vmem:[%s385 + $0x10] sm:$0xff]
        %v544 = vld [vmem:[%s385 + $0x18] sm:$0xff]
        %v545 = vld [vmem:[%s385 + $0x20] sm:$0xff]
        %v546 = vld [vmem:[%s385 + $0x28] sm:$0xff]
        %v547 = vld [vmem:[%s385 + $0x30] sm:$0xff]
        %v548 = vld [vmem:[%s385 + $0x38] sm:$0xff]
        %v549 = vld [vmem:[%s385 + $0x40] sm:$0xff]
        %v550 = vld [vmem:[%s385 + $0x48] sm:$0xff]
        %v551 = vld [vmem:[%s385 + $0x50] sm:$0xff]
        %v552 = vld [vmem:[%s385 + $0x58] sm:$0xff]
        %v553 = vld [vmem:[%s385 + $0x60] sm:$0xff]
        %v554 = vld [vmem:[%s385 + $0x68] sm:$0xff]
        %v555 = vld [vmem:[%s385 + $0x70] sm:$0xff]
        %v556 = vld [vmem:[%s385 + $0x78] sm:$0xff]
        %v557 = vld [vmem:[%s385 + $0x80] sm:$0xff]
        %v558 = vld [vmem:[%s385 + $0x88] sm:$0xff]
        %v559 = vld [vmem:[%s385 + $0x90] sm:$0xff]
        %v560 = vld [vmem:[%s385 + $0x98] sm:$0xff]
        %v561 = vld [vmem:[%s385 + $0xa0] sm:$0xff]
        %v562 = vld [vmem:[%s385 + $0xa8] sm:$0xff]
        %v563 = vld [vmem:[%s385 + $0xb0] sm:$0xff]
        %v564 = vld [vmem:[%s385 + $0xb8] sm:$0xff]
        %v565 = vld [vmem:[%s385 + $0xc0] sm:$0xff]
        %v566 = vld [vmem:[%s385 + $0xc8] sm:$0xff]
        %v567 = vld [vmem:[%s385 + $0xd0] sm:$0xff]
        %v568 = vld [vmem:[%s385 + $0xd8] sm:$0xff]
        %v569 = vld [vmem:[%s385 + $0xe0] sm:$0xff]
        %v570 = vld [vmem:[%s385 + $0xe8] sm:$0xff]
        %v571 = vld [vmem:[%s385 + $0xf0] sm:$0xff]
        %v572 = vld [vmem:[%s385 + $0xf8] sm:$0xff]
        %v573 = vld [vmem:[%s385 + $0x100] sm:$0xff]
        %v574 = vld [vmem:[%s385 + $0x108] sm:$0xff]
        %v575 = vld [vmem:[%s385 + $0x110] sm:$0xff]
        %v576 = vld [vmem:[%s385 + $0x118] sm:$0xff]
        %v577 = vld [vmem:[%s385 + $0x120] sm:$0xff]
        %v578 = vld [vmem:[%s385 + $0x128] sm:$0xff]
        %v579 = vld [vmem:[%s385 + $0x130] sm:$0xff]
        %v580 = vld [vmem:[%s385 + $0x138] sm:$0xff]
        %v581 = vld [vmem:[%s385 + $0x140] sm:$0xff]
        %v582 = vld [vmem:[%s385 + $0x148] sm:$0xff]
        %v583 = vld [vmem:[%s385 + $0x150] sm:$0xff]
        %v584 = vld [vmem:[%s385 + $0x158] sm:$0xff]
        %v585 = vld [vmem:[%s385 + $0x160] sm:$0xff]
        %v586 = vld [vmem:[%s385 + $0x168] sm:$0xff]
        %v587 = vld [vmem:[%s385 + $0x170] sm:$0xff]
        %v588 = vld [vmem:[%s385 + $0x178] sm:$0xff]
        %v589 = vld [vmem:[%s385 + $0x180] sm:$0xff]
        %v590 = vld [vmem:[%s385 + $0x188] sm:$0xff]
        %v591 = vld [vmem:[%s385 + $0x190] sm:$0xff]
        %v592 = vld [vmem:[%s385 + $0x198] sm:$0xff]
        %v593 = vld [vmem:[%s385 + $0x1a0] sm:$0xff]
        %v594 = vld [vmem:[%s385 + $0x1a8] sm:$0xff]
        %v595 = vld [vmem:[%s385 + $0x1b0] sm:$0xff]
        %v596 = vld [vmem:[%s385 + $0x1b8] sm:$0xff]
        %v597 = vld [vmem:[%s385 + $0x1c0] sm:$0xff]
        %v598 = vld [vmem:[%s385 + $0x1c8] sm:$0xff]
        %v599 = vld [vmem:[%s385 + $0x1d0] sm:$0xff]
        %v600 = vld [vmem:[%s385 + $0x1d8] sm:$0xff]
        %v601 = vld [vmem:[%s385 + $0x1e0] sm:$0xff]
        %v602 = vld [vmem:[%s385 + $0x1e8] sm:$0xff]
        %v603 = vld [vmem:[%s385 + $0x1f0] sm:$0xff]
        %v604 = vld [vmem:[%s385 + $0x1f8] sm:$0xff]
        %v621 = vunpack.c.l.b16 %v525
        %v622 = vunpack.c.h.b16 %v525
        %v623 = vunpack.c.l.b16 %v526
        %v624 = vunpack.c.h.b16 %v526
        %v625 = vunpack.c.l.b16 %v527
        %v626 = vunpack.c.h.b16 %v527
        %v627 = vunpack.c.l.b16 %v528
        %v628 = vunpack.c.h.b16 %v528
        %v629 = vunpack.c.l.b16 %v529
        %v630 = vunpack.c.h.b16 %v529
        %v631 = vunpack.c.l.b16 %v530
        %v632 = vunpack.c.h.b16 %v530
        %v633 = vunpack.c.l.b16 %v531
        %v634 = vunpack.c.h.b16 %v531
        %v635 = vunpack.c.l.b16 %v532
        %v636 = vunpack.c.h.b16 %v532
        %v637 = vunpack.c.l.b16 %v533
        %v638 = vunpack.c.h.b16 %v533
        %v639 = vunpack.c.l.b16 %v534
        %v640 = vunpack.c.h.b16 %v534
        %v641 = vunpack.c.l.b16 %v535
        %v642 = vunpack.c.h.b16 %v535
        %v643 = vunpack.c.l.b16 %v536
        %v644 = vunpack.c.h.b16 %v536
        %v645 = vunpack.c.l.b16 %v537
        %v646 = vunpack.c.h.b16 %v537
        %v647 = vunpack.c.l.b16 %v538
        %v648 = vunpack.c.h.b16 %v538
        %v649 = vunpack.c.l.b16 %v539
        %v650 = vunpack.c.h.b16 %v539
        %v651 = vunpack.c.l.b16 %v540
        %v652 = vunpack.c.h.b16 %v540
        %v653 = vpack.c.b16 %v623, %v621
        %v654 = vpack.c.b16 %v624, %v622
        %v655 = vpack.c.b16 %v627, %v625
        %v656 = vpack.c.b16 %v628, %v626
        %v657 = vpack.c.b16 %v631, %v629
        %v658 = vpack.c.b16 %v632, %v630
        %v659 = vpack.c.b16 %v635, %v633
        %v660 = vpack.c.b16 %v636, %v634
        %v661 = vpack.c.b16 %v639, %v637
        %v662 = vpack.c.b16 %v640, %v638
        %v663 = vpack.c.b16 %v643, %v641
        %v664 = vpack.c.b16 %v644, %v642
        %v665 = vpack.c.b16 %v647, %v645
        %v666 = vpack.c.b16 %v648, %v646
        %v667 = vpack.c.b16 %v651, %v649
        %v668 = vpack.c.b16 %v652, %v650
        %v749 = vunpack.c.l.b16 %v541
        %v750 = vunpack.c.h.b16 %v541
        %v751 = vunpack.c.l.b16 %v542
        %v752 = vunpack.c.h.b16 %v542
        %v753 = vunpack.c.l.b16 %v543
        %v754 = vunpack.c.h.b16 %v543
        %v755 = vunpack.c.l.b16 %v544
        %v756 = vunpack.c.h.b16 %v544
        %v757 = vunpack.c.l.b16 %v545
        %v758 = vunpack.c.h.b16 %v545
        %v759 = vunpack.c.l.b16 %v546
        %v760 = vunpack.c.h.b16 %v546
        %v761 = vunpack.c.l.b16 %v547
        %v762 = vunpack.c.h.b16 %v547
        %v763 = vunpack.c.l.b16 %v548
        %v764 = vunpack.c.h.b16 %v548
        %v765 = vunpack.c.l.b16 %v549
        %v766 = vunpack.c.h.b16 %v549
        %v767 = vunpack.c.l.b16 %v550
        %v768 = vunpack.c.h.b16 %v550
        %v769 = vunpack.c.l.b16 %v551
        %v770 = vunpack.c.h.b16 %v551
        %v771 = vunpack.c.l.b16 %v552
        %v772 = vunpack.c.h.b16 %v552
        %v773 = vunpack.c.l.b16 %v553
        %v774 = vunpack.c.h.b16 %v553
        %v775 = vunpack.c.l.b16 %v554
        %v776 = vunpack.c.h.b16 %v554
        %v777 = vunpack.c.l.b16 %v555
        %v778 = vunpack.c.h.b16 %v555
        %v779 = vunpack.c.l.b16 %v556
        %v780 = vunpack.c.h.b16 %v556
        %v781 = vunpack.c.l.b16 %v557
        %v782 = vunpack.c.h.b16 %v557
        %v783 = vunpack.c.l.b16 %v558
        %v784 = vunpack.c.h.b16 %v558
        %v785 = vunpack.c.l.b16 %v559
        %v786 = vunpack.c.h.b16 %v559
        %v787 = vunpack.c.l.b16 %v560
        %v788 = vunpack.c.h.b16 %v560
        %v789 = vunpack.c.l.b16 %v561
        %v790 = vunpack.c.h.b16 %v561
        %v791 = vunpack.c.l.b16 %v562
        %v792 = vunpack.c.h.b16 %v562
        %v793 = vunpack.c.l.b16 %v563
        %v794 = vunpack.c.h.b16 %v563
        %v795 = vunpack.c.l.b16 %v564
        %v796 = vunpack.c.h.b16 %v564
        %v797 = vunpack.c.l.b16 %v565
        %v798 = vunpack.c.h.b16 %v565
        %v799 = vunpack.c.l.b16 %v566
        %v800 = vunpack.c.h.b16 %v566
        %v801 = vunpack.c.l.b16 %v567
        %v802 = vunpack.c.h.b16 %v567
        %v803 = vunpack.c.l.b16 %v568
        %v804 = vunpack.c.h.b16 %v568
        %v805 = vunpack.c.l.b16 %v569
        %v806 = vunpack.c.h.b16 %v569
        %v807 = vunpack.c.l.b16 %v570
        %v808 = vunpack.c.h.b16 %v570
        %v809 = vunpack.c.l.b16 %v571
        %v810 = vunpack.c.h.b16 %v571
        %v811 = vunpack.c.l.b16 %v572
        %v812 = vunpack.c.h.b16 %v572
        %v813 = vunpack.c.l.b16 %v573
        %v814 = vunpack.c.h.b16 %v573
        %v815 = vunpack.c.l.b16 %v574
        %v816 = vunpack.c.h.b16 %v574
        %v817 = vunpack.c.l.b16 %v575
        %v818 = vunpack.c.h.b16 %v575
        %v819 = vunpack.c.l.b16 %v576
        %v820 = vunpack.c.h.b16 %v576
        %v821 = vunpack.c.l.b16 %v577
        %v822 = vunpack.c.h.b16 %v577
        %v823 = vunpack.c.l.b16 %v578
        %v824 = vunpack.c.h.b16 %v578
        %v825 = vunpack.c.l.b16 %v579
        %v826 = vunpack.c.h.b16 %v579
        %v827 = vunpack.c.l.b16 %v580
        %v828 = vunpack.c.h.b16 %v580
        %v829 = vunpack.c.l.b16 %v581
        %v830 = vunpack.c.h.b16 %v581
        %v831 = vunpack.c.l.b16 %v582
        %v832 = vunpack.c.h.b16 %v582
        %v833 = vunpack.c.l.b16 %v583
        %v834 = vunpack.c.h.b16 %v583
        %v835 = vunpack.c.l.b16 %v584
        %v836 = vunpack.c.h.b16 %v584
        %v837 = vunpack.c.l.b16 %v585
        %v838 = vunpack.c.h.b16 %v585
        %v839 = vunpack.c.l.b16 %v586
        %v840 = vunpack.c.h.b16 %v586
        %v841 = vunpack.c.l.b16 %v587
        %v842 = vunpack.c.h.b16 %v587
        %v843 = vunpack.c.l.b16 %v588
        %v844 = vunpack.c.h.b16 %v588
        %v845 = vunpack.c.l.b16 %v589
        %v846 = vunpack.c.h.b16 %v589
        %v847 = vunpack.c.l.b16 %v590
        %v848 = vunpack.c.h.b16 %v590
        %v849 = vunpack.c.l.b16 %v591
        %v850 = vunpack.c.h.b16 %v591
        %v851 = vunpack.c.l.b16 %v592
        %v852 = vunpack.c.h.b16 %v592
        %v853 = vunpack.c.l.b16 %v593
        %v854 = vunpack.c.h.b16 %v593
        %v855 = vunpack.c.l.b16 %v594
        %v856 = vunpack.c.h.b16 %v594
        %v857 = vunpack.c.l.b16 %v595
        %v858 = vunpack.c.h.b16 %v595
        %v859 = vunpack.c.l.b16 %v596
        %v860 = vunpack.c.h.b16 %v596
        %v861 = vunpack.c.l.b16 %v597
        %v862 = vunpack.c.h.b16 %v597
        %v863 = vunpack.c.l.b16 %v598
        %v864 = vunpack.c.h.b16 %v598
        %v865 = vunpack.c.l.b16 %v599
        %v866 = vunpack.c.h.b16 %v599
        %v867 = vunpack.c.l.b16 %v600
        %v868 = vunpack.c.h.b16 %v600
        %v869 = vunpack.c.l.b16 %v601
        %v870 = vunpack.c.h.b16 %v601
        %v871 = vunpack.c.l.b16 %v602
        %v872 = vunpack.c.h.b16 %v602
        %v873 = vunpack.c.l.b16 %v603
        %v874 = vunpack.c.h.b16 %v603
        %v875 = vunpack.c.l.b16 %v604
        %v876 = vunpack.c.h.b16 %v604
        %v877 = vpack.c.b16 %v753, %v749
        %v878 = vpack.c.b16 %v754, %v750
        %v879 = vpack.c.b16 %v755, %v751
        %v880 = vpack.c.b16 %v756, %v752
        %v881 = vpack.c.b16 %v761, %v757
        %v882 = vpack.c.b16 %v762, %v758
        %v883 = vpack.c.b16 %v763, %v759
        %v884 = vpack.c.b16 %v764, %v760
        %v885 = vpack.c.b16 %v769, %v765
        %v886 = vpack.c.b16 %v770, %v766
        %v887 = vpack.c.b16 %v771, %v767
        %v888 = vpack.c.b16 %v772, %v768
        %v889 = vpack.c.b16 %v777, %v773
        %v890 = vpack.c.b16 %v778, %v774
        %v891 = vpack.c.b16 %v779, %v775
        %v892 = vpack.c.b16 %v780, %v776
        %v893 = vpack.c.b16 %v785, %v781
        %v894 = vpack.c.b16 %v786, %v782
        %v895 = vpack.c.b16 %v787, %v783
        %v896 = vpack.c.b16 %v788, %v784
        %v897 = vpack.c.b16 %v793, %v789
        %v898 = vpack.c.b16 %v794, %v790
        %v899 = vpack.c.b16 %v795, %v791
        %v900 = vpack.c.b16 %v796, %v792
        %v901 = vpack.c.b16 %v801, %v797
        %v902 = vpack.c.b16 %v802, %v798
        %v903 = vpack.c.b16 %v803, %v799
        %v904 = vpack.c.b16 %v804, %v800
        %v905 = vpack.c.b16 %v809, %v805
        %v906 = vpack.c.b16 %v810, %v806
        %v907 = vpack.c.b16 %v811, %v807
        %v908 = vpack.c.b16 %v812, %v808
        %v909 = vpack.c.b16 %v817, %v813
        %v910 = vpack.c.b16 %v818, %v814
        %v911 = vpack.c.b16 %v819, %v815
        %v912 = vpack.c.b16 %v820, %v816
        %v913 = vpack.c.b16 %v825, %v821
        %v914 = vpack.c.b16 %v826, %v822
        %v915 = vpack.c.b16 %v827, %v823
        %v916 = vpack.c.b16 %v828, %v824
        %v917 = vpack.c.b16 %v833, %v829
        %v918 = vpack.c.b16 %v834, %v830
        %v919 = vpack.c.b16 %v835, %v831
        %v920 = vpack.c.b16 %v836, %v832
        %v921 = vpack.c.b16 %v841, %v837
        %v922 = vpack.c.b16 %v842, %v838
        %v923 = vpack.c.b16 %v843, %v839
        %v924 = vpack.c.b16 %v844, %v840
        %v925 = vpack.c.b16 %v849, %v845
        %v926 = vpack.c.b16 %v850, %v846
        %v927 = vpack.c.b16 %v851, %v847
        %v928 = vpack.c.b16 %v852, %v848
        %v929 = vpack.c.b16 %v857, %v853
        %v930 = vpack.c.b16 %v858, %v854
        %v931 = vpack.c.b16 %v859, %v855
        %v932 = vpack.c.b16 %v860, %v856
        %v933 = vpack.c.b16 %v865, %v861
        %v934 = vpack.c.b16 %v866, %v862
        %v935 = vpack.c.b16 %v867, %v863
        %v936 = vpack.c.b16 %v868, %v864
        %v937 = vpack.c.b16 %v873, %v869
        %v938 = vpack.c.b16 %v874, %v870
        %v939 = vpack.c.b16 %v875, %v871
        %v940 = vpack.c.b16 %v876, %v872
        %1005 = vmatpush.bf16.msra.mxu0 %v905
        %1006 = vmatpush.bf16.msra.mxu0 %v901
        %1007 = vmatpush.bf16.msra.mxu0 %v897
        %1008 = vmatpush.bf16.msra.mxu0 %v893
        %1009 = vmatpush.bf16.msra.mxu0 %v889
        %1010 = vmatpush.bf16.msra.mxu0 %v885
        %1011 = vmatpush.bf16.msra.mxu0 %v881
        %1012 = vmatpush.bf16.msra.mxu0 %v877
        %1013 = vmatmul.bf16.gmra.mxu0 %v653
        %v1014 = vpop.f32.mrf.mxu0
        %v1015 = vadd.f32 0.0, %v1014
        %v1016 = vpop.f32.mrf.mxu0
        %v1017 = vadd.f32 0.0, %v1016
        %1018 = vmatmul.bf16.gmra.mxu0 %v655
        %v1019 = vpop.f32.mrf.mxu0
        %v1020 = vadd.f32 0.0, %v1019
        %v1021 = vpop.f32.mrf.mxu0
        %v1022 = vadd.f32 0.0, %v1021
        %1023 = vmatmul.bf16.gmra.mxu0 %v657
        %v1024 = vpop.f32.mrf.mxu0
        %v1025 = vadd.f32 0.0, %v1024
        %v1026 = vpop.f32.mrf.mxu0
        %v1027 = vadd.f32 0.0, %v1026
        %1028 = vmatmul.bf16.gmra.mxu0 %v659
        %v1029 = vpop.f32.mrf.mxu0
        %v1030 = vadd.f32 0.0, %v1029
        %v1031 = vpop.f32.mrf.mxu0
        %v1032 = vadd.f32 0.0, %v1031
        %1033 = vmatmul.bf16.gmra.mxu0 %v661
        %v1034 = vpop.f32.mrf.mxu0
        %v1035 = vadd.f32 0.0, %v1034
        %v1036 = vpop.f32.mrf.mxu0
        %v1037 = vadd.f32 0.0, %v1036
        %1038 = vmatmul.bf16.gmra.mxu0 %v663
        %v1039 = vpop.f32.mrf.mxu0
        %v1040 = vadd.f32 0.0, %v1039
        %v1041 = vpop.f32.mrf.mxu0
        %v1042 = vadd.f32 0.0, %v1041
        %1043 = vmatmul.bf16.gmra.mxu0 %v665
        %v1044 = vpop.f32.mrf.mxu0
        %v1045 = vadd.f32 0.0, %v1044
        %v1046 = vpop.f32.mrf.mxu0
        %v1047 = vadd.f32 0.0, %v1046
        %1048 = vmatmul.bf16.gmra.mxu0 %v667
        %v1049 = vpop.f32.mrf.mxu0
        %v1050 = vadd.f32 0.0, %v1049
        %v1051 = vpop.f32.mrf.mxu0
        %v1052 = vadd.f32 0.0, %v1051
        %1053 = vdwg.mxu0
        %1054 = vmatpush.bf16.msra.mxu0 %v937
        %1055 = vmatpush.bf16.msra.mxu0 %v933
        %1056 = vmatpush.bf16.msra.mxu0 %v929
        %1057 = vmatpush.bf16.msra.mxu0 %v925
        %1058 = vmatpush.bf16.msra.mxu0 %v921
        %1059 = vmatpush.bf16.msra.mxu0 %v917
        %1060 = vmatpush.bf16.msra.mxu0 %v913
        %1061 = vmatpush.bf16.msra.mxu0 %v909
        %1062 = vmatmul.bf16.gmra.mxu0 %v654
        %v1063 = vpop.f32.mrf.mxu0
        %v1064 = vadd.f32 %v1015, %v1063
        %v1065 = vpop.f32.mrf.mxu0
        %v1066 = vadd.f32 %v1017, %v1065
        %1067 = vmatmul.bf16.gmra.mxu0 %v656
        %v1068 = vpop.f32.mrf.mxu0
        %v1069 = vadd.f32 %v1020, %v1068
        %v1070 = vpop.f32.mrf.mxu0
        %v1071 = vadd.f32 %v1022, %v1070
        %1072 = vmatmul.bf16.gmra.mxu0 %v658
        %v1073 = vpop.f32.mrf.mxu0
        %v1074 = vadd.f32 %v1025, %v1073
        %v1075 = vpop.f32.mrf.mxu0
        %v1076 = vadd.f32 %v1027, %v1075
        %1077 = vmatmul.bf16.gmra.mxu0 %v660
        %v1078 = vpop.f32.mrf.mxu0
        %v1079 = vadd.f32 %v1030, %v1078
        %v1080 = vpop.f32.mrf.mxu0
        %v1081 = vadd.f32 %v1032, %v1080
        %1082 = vmatmul.bf16.gmra.mxu0 %v662
        %v1083 = vpop.f32.mrf.mxu0
        %v1084 = vadd.f32 %v1035, %v1083
        %v1085 = vpop.f32.mrf.mxu0
        %v1086 = vadd.f32 %v1037, %v1085
        %1087 = vmatmul.bf16.gmra.mxu0 %v664
        %v1088 = vpop.f32.mrf.mxu0
        %v1089 = vadd.f32 %v1040, %v1088
        %v1090 = vpop.f32.mrf.mxu0
        %v1091 = vadd.f32 %v1042, %v1090
        %1092 = vmatmul.bf16.gmra.mxu0 %v666
        %v1093 = vpop.f32.mrf.mxu0
        %v1094 = vadd.f32 %v1045, %v1093
        %v1095 = vpop.f32.mrf.mxu0
        %v1096 = vadd.f32 %v1047, %v1095
        %1097 = vmatmul.bf16.gmra.mxu0 %v668
        %v1098 = vpop.f32.mrf.mxu0
        %v1099 = vadd.f32 %v1050, %v1098
        %v1100 = vpop.f32.mrf.mxu0
        %v1101 = vadd.f32 %v1052, %v1100
        %1102 = vdwg.mxu0
        %1103 = vmatpush.bf16.msra.mxu0 %v906
        %1104 = vmatpush.bf16.msra.mxu0 %v902
        %1105 = vmatpush.bf16.msra.mxu0 %v898
        %1106 = vmatpush.bf16.msra.mxu0 %v894
        %1107 = vmatpush.bf16.msra.mxu0 %v890
        %1108 = vmatpush.bf16.msra.mxu0 %v886
        %1109 = vmatpush.bf16.msra.mxu0 %v882
        %1110 = vmatpush.bf16.msra.mxu0 %v878
        %1111 = vmatmul.bf16.gmra.mxu0 %v653
        %v1112 = vpop.f32.mrf.mxu0
        %v1113 = vadd.f32 0.0, %v1112
        %v1114 = vpop.f32.mrf.mxu0
        %v1115 = vadd.f32 0.0, %v1114
        %1116 = vmatmul.bf16.gmra.mxu0 %v655
        %v1117 = vpop.f32.mrf.mxu0
        %v1118 = vadd.f32 0.0, %v1117
        %v1119 = vpop.f32.mrf.mxu0
        %v1120 = vadd.f32 0.0, %v1119
        %1121 = vmatmul.bf16.gmra.mxu0 %v657
        %v1122 = vpop.f32.mrf.mxu0
        %v1123 = vadd.f32 0.0, %v1122
        %v1124 = vpop.f32.mrf.mxu0
        %v1125 = vadd.f32 0.0, %v1124
        %1126 = vmatmul.bf16.gmra.mxu0 %v659
        %v1127 = vpop.f32.mrf.mxu0
        %v1128 = vadd.f32 0.0, %v1127
        %v1129 = vpop.f32.mrf.mxu0
        %v1130 = vadd.f32 0.0, %v1129
        %1131 = vmatmul.bf16.gmra.mxu0 %v661
        %v1132 = vpop.f32.mrf.mxu0
        %v1133 = vadd.f32 0.0, %v1132
        %v1134 = vpop.f32.mrf.mxu0
        %v1135 = vadd.f32 0.0, %v1134
        %1136 = vmatmul.bf16.gmra.mxu0 %v663
        %v1137 = vpop.f32.mrf.mxu0
        %v1138 = vadd.f32 0.0, %v1137
        %v1139 = vpop.f32.mrf.mxu0
        %v1140 = vadd.f32 0.0, %v1139
        %1141 = vmatmul.bf16.gmra.mxu0 %v665
        %v1142 = vpop.f32.mrf.mxu0
        %v1143 = vadd.f32 0.0, %v1142
        %v1144 = vpop.f32.mrf.mxu0
        %v1145 = vadd.f32 0.0, %v1144
        %1146 = vmatmul.bf16.gmra.mxu0 %v667
        %v1147 = vpop.f32.mrf.mxu0
        %v1148 = vadd.f32 0.0, %v1147
        %v1149 = vpop.f32.mrf.mxu0
        %v1150 = vadd.f32 0.0, %v1149
        %1151 = vdwg.mxu0
        %1152 = vmatpush.bf16.msra.mxu0 %v938
        %1153 = vmatpush.bf16.msra.mxu0 %v934
        %1154 = vmatpush.bf16.msra.mxu0 %v930
        %1155 = vmatpush.bf16.msra.mxu0 %v926
        %1156 = vmatpush.bf16.msra.mxu0 %v922
        %1157 = vmatpush.bf16.msra.mxu0 %v918
        %1158 = vmatpush.bf16.msra.mxu0 %v914
        %1159 = vmatpush.bf16.msra.mxu0 %v910
        %1160 = vmatmul.bf16.gmra.mxu0 %v654
        %v1161 = vpop.f32.mrf.mxu0
        %v1162 = vadd.f32 %v1113, %v1161
        %v1163 = vpop.f32.mrf.mxu0
        %v1164 = vadd.f32 %v1115, %v1163
        %1165 = vmatmul.bf16.gmra.mxu0 %v656
        %v1166 = vpop.f32.mrf.mxu0
        %v1167 = vadd.f32 %v1118, %v1166
        %v1168 = vpop.f32.mrf.mxu0
        %v1169 = vadd.f32 %v1120, %v1168
        %1170 = vmatmul.bf16.gmra.mxu0 %v658
        %v1171 = vpop.f32.mrf.mxu0
        %v1172 = vadd.f32 %v1123, %v1171
        %v1173 = vpop.f32.mrf.mxu0
        %v1174 = vadd.f32 %v1125, %v1173
        %1175 = vmatmul.bf16.gmra.mxu0 %v660
        %v1176 = vpop.f32.mrf.mxu0
        %v1177 = vadd.f32 %v1128, %v1176
        %v1178 = vpop.f32.mrf.mxu0
        %v1179 = vadd.f32 %v1130, %v1178
        %1180 = vmatmul.bf16.gmra.mxu0 %v662
        %v1181 = vpop.f32.mrf.mxu0
        %v1182 = vadd.f32 %v1133, %v1181
        %v1183 = vpop.f32.mrf.mxu0
        %v1184 = vadd.f32 %v1135, %v1183
        %1185 = vmatmul.bf16.gmra.mxu0 %v664
        %v1186 = vpop.f32.mrf.mxu0
        %v1187 = vadd.f32 %v1138, %v1186
        %v1188 = vpop.f32.mrf.mxu0
        %v1189 = vadd.f32 %v1140, %v1188
        %1190 = vmatmul.bf16.gmra.mxu0 %v666
        %v1191 = vpop.f32.mrf.mxu0
        %v1192 = vadd.f32 %v1143, %v1191
        %v1193 = vpop.f32.mrf.mxu0
        %v1194 = vadd.f32 %v1145, %v1193
        %1195 = vmatmul.bf16.gmra.mxu0 %v668
        %v1196 = vpop.f32.mrf.mxu0
        %v1197 = vadd.f32 %v1148, %v1196
        %v1198 = vpop.f32.mrf.mxu0
        %v1199 = vadd.f32 %v1150, %v1198
        %1200 = vdwg.mxu0
        %1201 = vmatpush.bf16.msra.mxu0 %v907
        %1202 = vmatpush.bf16.msra.mxu0 %v903
        %1203 = vmatpush.bf16.msra.mxu0 %v899
        %1204 = vmatpush.bf16.msra.mxu0 %v895
        %1205 = vmatpush.bf16.msra.mxu0 %v891
        %1206 = vmatpush.bf16.msra.mxu0 %v887
        %1207 = vmatpush.bf16.msra.mxu0 %v883
        %1208 = vmatpush.bf16.msra.mxu0 %v879
        %1209 = vmatmul.bf16.gmra.mxu0 %v653
        %v1210 = vpop.f32.mrf.mxu0
        %v1211 = vadd.f32 0.0, %v1210
        %v1212 = vpop.f32.mrf.mxu0
        %v1213 = vadd.f32 0.0, %v1212
        %1214 = vmatmul.bf16.gmra.mxu0 %v655
        %v1215 = vpop.f32.mrf.mxu0
        %v1216 = vadd.f32 0.0, %v1215
        %v1217 = vpop.f32.mrf.mxu0
        %v1218 = vadd.f32 0.0, %v1217
        %1219 = vmatmul.bf16.gmra.mxu0 %v657
        %v1220 = vpop.f32.mrf.mxu0
        %v1221 = vadd.f32 0.0, %v1220
        %v1222 = vpop.f32.mrf.mxu0
        %v1223 = vadd.f32 0.0, %v1222
        %1224 = vmatmul.bf16.gmra.mxu0 %v659
        %v1225 = vpop.f32.mrf.mxu0
        %v1226 = vadd.f32 0.0, %v1225
        %v1227 = vpop.f32.mrf.mxu0
        %v1228 = vadd.f32 0.0, %v1227
        %1229 = vmatmul.bf16.gmra.mxu0 %v661
        %v1230 = vpop.f32.mrf.mxu0
        %v1231 = vadd.f32 0.0, %v1230
        %v1232 = vpop.f32.mrf.mxu0
        %v1233 = vadd.f32 0.0, %v1232
        %1234 = vmatmul.bf16.gmra.mxu0 %v663
        %v1235 = vpop.f32.mrf.mxu0
        %v1236 = vadd.f32 0.0, %v1235
        %v1237 = vpop.f32.mrf.mxu0
        %v1238 = vadd.f32 0.0, %v1237
        %1239 = vmatmul.bf16.gmra.mxu0 %v665
        %v1240 = vpop.f32.mrf.mxu0
        %v1241 = vadd.f32 0.0, %v1240
        %v1242 = vpop.f32.mrf.mxu0
        %v1243 = vadd.f32 0.0, %v1242
        %1244 = vmatmul.bf16.gmra.mxu0 %v667
        %v1245 = vpop.f32.mrf.mxu0
        %v1246 = vadd.f32 0.0, %v1245
        %v1247 = vpop.f32.mrf.mxu0
        %v1248 = vadd.f32 0.0, %v1247
        %1249 = vdwg.mxu0
        %1250 = vmatpush.bf16.msra.mxu0 %v939
        %1251 = vmatpush.bf16.msra.mxu0 %v935
        %1252 = vmatpush.bf16.msra.mxu0 %v931
        %1253 = vmatpush.bf16.msra.mxu0 %v927
        %1254 = vmatpush.bf16.msra.mxu0 %v923
        %1255 = vmatpush.bf16.msra.mxu0 %v919
        %1256 = vmatpush.bf16.msra.mxu0 %v915
        %1257 = vmatpush.bf16.msra.mxu0 %v911
        %1258 = vmatmul.bf16.gmra.mxu0 %v654
        %v1259 = vpop.f32.mrf.mxu0
        %v1260 = vadd.f32 %v1211, %v1259
        %v1261 = vpop.f32.mrf.mxu0
        %v1262 = vadd.f32 %v1213, %v1261
        %1263 = vmatmul.bf16.gmra.mxu0 %v656
        %v1264 = vpop.f32.mrf.mxu0
        %v1265 = vadd.f32 %v1216, %v1264
        %v1266 = vpop.f32.mrf.mxu0
        %v1267 = vadd.f32 %v1218, %v1266
        %1268 = vmatmul.bf16.gmra.mxu0 %v658
        %v1269 = vpop.f32.mrf.mxu0
        %v1270 = vadd.f32 %v1221, %v1269
        %v1271 = vpop.f32.mrf.mxu0
        %v1272 = vadd.f32 %v1223, %v1271
        %1273 = vmatmul.bf16.gmra.mxu0 %v660
        %v1274 = vpop.f32.mrf.mxu0
        %v1275 = vadd.f32 %v1226, %v1274
        %v1276 = vpop.f32.mrf.mxu0
        %v1277 = vadd.f32 %v1228, %v1276
        %1278 = vmatmul.bf16.gmra.mxu0 %v662
        %v1279 = vpop.f32.mrf.mxu0
        %v1280 = vadd.f32 %v1231, %v1279
        %v1281 = vpop.f32.mrf.mxu0
        %v1282 = vadd.f32 %v1233, %v1281
        %1283 = vmatmul.bf16.gmra.mxu0 %v664
        %v1284 = vpop.f32.mrf.mxu0
        %v1285 = vadd.f32 %v1236, %v1284
        %v1286 = vpop.f32.mrf.mxu0
        %v1287 = vadd.f32 %v1238, %v1286
        %1288 = vmatmul.bf16.gmra.mxu0 %v666
        %v1289 = vpop.f32.mrf.mxu0
        %v1290 = vadd.f32 %v1241, %v1289
        %v1291 = vpop.f32.mrf.mxu0
        %v1292 = vadd.f32 %v1243, %v1291
        %1293 = vmatmul.bf16.gmra.mxu0 %v668
        %v1294 = vpop.f32.mrf.mxu0
        %v1295 = vadd.f32 %v1246, %v1294
        %v1296 = vpop.f32.mrf.mxu0
        %v1297 = vadd.f32 %v1248, %v1296
        %1298 = vdwg.mxu0
        %1299 = vmatpush.bf16.msra.mxu0 %v908
        %1300 = vmatpush.bf16.msra.mxu0 %v904
        %1301 = vmatpush.bf16.msra.mxu0 %v900
        %1302 = vmatpush.bf16.msra.mxu0 %v896
        %1303 = vmatpush.bf16.msra.mxu0 %v892
        %1304 = vmatpush.bf16.msra.mxu0 %v888
        %1305 = vmatpush.bf16.msra.mxu0 %v884
        %1306 = vmatpush.bf16.msra.mxu0 %v880
        %1307 = vmatmul.bf16.gmra.mxu0 %v653
        %v1308 = vpop.f32.mrf.mxu0
        %v1309 = vadd.f32 0.0, %v1308
        %v1310 = vpop.f32.mrf.mxu0
        %v1311 = vadd.f32 0.0, %v1310
        %1312 = vmatmul.bf16.gmra.mxu0 %v655
        %v1313 = vpop.f32.mrf.mxu0
        %v1314 = vadd.f32 0.0, %v1313
        %v1315 = vpop.f32.mrf.mxu0
        %v1316 = vadd.f32 0.0, %v1315
        %1317 = vmatmul.bf16.gmra.mxu0 %v657
        %v1318 = vpop.f32.mrf.mxu0
        %v1319 = vadd.f32 0.0, %v1318
        %v1320 = vpop.f32.mrf.mxu0
        %v1321 = vadd.f32 0.0, %v1320
        %1322 = vmatmul.bf16.gmra.mxu0 %v659
        %v1323 = vpop.f32.mrf.mxu0
        %v1324 = vadd.f32 0.0, %v1323
        %v1325 = vpop.f32.mrf.mxu0
        %v1326 = vadd.f32 0.0, %v1325
        %1327 = vmatmul.bf16.gmra.mxu0 %v661
        %v1328 = vpop.f32.mrf.mxu0
        %v1329 = vadd.f32 0.0, %v1328
        %v1330 = vpop.f32.mrf.mxu0
        %v1331 = vadd.f32 0.0, %v1330
        %1332 = vmatmul.bf16.gmra.mxu0 %v663
        %v1333 = vpop.f32.mrf.mxu0
        %v1334 = vadd.f32 0.0, %v1333
        %v1335 = vpop.f32.mrf.mxu0
        %v1336 = vadd.f32 0.0, %v1335
        %1337 = vmatmul.bf16.gmra.mxu0 %v665
        %v1338 = vpop.f32.mrf.mxu0
        %v1339 = vadd.f32 0.0, %v1338
        %v1340 = vpop.f32.mrf.mxu0
        %v1341 = vadd.f32 0.0, %v1340
        %1342 = vmatmul.bf16.gmra.mxu0 %v667
        %v1343 = vpop.f32.mrf.mxu0
        %v1344 = vadd.f32 0.0, %v1343
        %v1345 = vpop.f32.mrf.mxu0
        %v1346 = vadd.f32 0.0, %v1345
        %1347 = vdwg.mxu0
        %1348 = vmatpush.bf16.msra.mxu0 %v940
        %1349 = vmatpush.bf16.msra.mxu0 %v936
        %1350 = vmatpush.bf16.msra.mxu0 %v932
        %1351 = vmatpush.bf16.msra.mxu0 %v928
        %1352 = vmatpush.bf16.msra.mxu0 %v924
        %1353 = vmatpush.bf16.msra.mxu0 %v920
        %1354 = vmatpush.bf16.msra.mxu0 %v916
        %1355 = vmatpush.bf16.msra.mxu0 %v912
        %1356 = vmatmul.bf16.gmra.mxu0 %v654
        %v1357 = vpop.f32.mrf.mxu0
        %v1358 = vadd.f32 %v1309, %v1357
        %v1359 = vpop.f32.mrf.mxu0
        %v1360 = vadd.f32 %v1311, %v1359
        %1361 = vmatmul.bf16.gmra.mxu0 %v656
        %v1362 = vpop.f32.mrf.mxu0
        %v1363 = vadd.f32 %v1314, %v1362
        %v1364 = vpop.f32.mrf.mxu0
        %v1365 = vadd.f32 %v1316, %v1364
        %1366 = vmatmul.bf16.gmra.mxu0 %v658
        %v1367 = vpop.f32.mrf.mxu0
        %v1368 = vadd.f32 %v1319, %v1367
        %v1369 = vpop.f32.mrf.mxu0
        %v1370 = vadd.f32 %v1321, %v1369
        %1371 = vmatmul.bf16.gmra.mxu0 %v660
        %v1372 = vpop.f32.mrf.mxu0
        %v1373 = vadd.f32 %v1324, %v1372
        %v1374 = vpop.f32.mrf.mxu0
        %v1375 = vadd.f32 %v1326, %v1374
        %1376 = vmatmul.bf16.gmra.mxu0 %v662
        %v1377 = vpop.f32.mrf.mxu0
        %v1378 = vadd.f32 %v1329, %v1377
        %v1379 = vpop.f32.mrf.mxu0
        %v1380 = vadd.f32 %v1331, %v1379
        %1381 = vmatmul.bf16.gmra.mxu0 %v664
        %v1382 = vpop.f32.mrf.mxu0
        %v1383 = vadd.f32 %v1334, %v1382
        %v1384 = vpop.f32.mrf.mxu0
        %v1385 = vadd.f32 %v1336, %v1384
        %1386 = vmatmul.bf16.gmra.mxu0 %v666
        %v1387 = vpop.f32.mrf.mxu0
        %v1388 = vadd.f32 %v1339, %v1387
        %v1389 = vpop.f32.mrf.mxu0
        %v1390 = vadd.f32 %v1341, %v1389
        %1391 = vmatmul.bf16.gmra.mxu0 %v668
        %v1392 = vpop.f32.mrf.mxu0
        %v1393 = vadd.f32 %v1344, %v1392
        %v1394 = vpop.f32.mrf.mxu0
        %v1395 = vadd.f32 %v1346, %v1394
        %1396 = vdwg.mxu0
        %v1397 = vadd.f32 %v461, %v1064
        %v1398 = vadd.f32 %v462, %v1162
        %v1399 = vadd.f32 %v463, %v1260
        %v1400 = vadd.f32 %v464, %v1358
        %v1401 = vadd.f32 %v465, %v1066
        %v1402 = vadd.f32 %v466, %v1164
        %v1403 = vadd.f32 %v467, %v1262
        %v1404 = vadd.f32 %v468, %v1360
        %v1405 = vadd.f32 %v469, %v1069
        %v1406 = vadd.f32 %v470, %v1167
        %v1407 = vadd.f32 %v471, %v1265
        %v1408 = vadd.f32 %v472, %v1363
        %v1409 = vadd.f32 %v473, %v1071
        %v1410 = vadd.f32 %v474, %v1169
        %v1411 = vadd.f32 %v475, %v1267
        %v1412 = vadd.f32 %v476, %v1365
        %v1413 = vadd.f32 %v477, %v1074
        %v1414 = vadd.f32 %v478, %v1172
        %v1415 = vadd.f32 %v479, %v1270
        %v1416 = vadd.f32 %v480, %v1368
        %v1417 = vadd.f32 %v481, %v1076
        %v1418 = vadd.f32 %v482, %v1174
        %v1419 = vadd.f32 %v483, %v1272
        %v1420 = vadd.f32 %v484, %v1370
        %v1421 = vadd.f32 %v485, %v1079
        %v1422 = vadd.f32 %v486, %v1177
        %v1423 = vadd.f32 %v487, %v1275
        %v1424 = vadd.f32 %v488, %v1373
        %v1425 = vadd.f32 %v489, %v1081
        %v1426 = vadd.f32 %v490, %v1179
        %v1427 = vadd.f32 %v491, %v1277
        %v1428 = vadd.f32 %v492, %v1375
        %v1429 = vadd.f32 %v493, %v1084
        %v1430 = vadd.f32 %v494, %v1182
        %v1431 = vadd.f32 %v495, %v1280
        %v1432 = vadd.f32 %v496, %v1378
        %v1433 = vadd.f32 %v497, %v1086
        %v1434 = vadd.f32 %v498, %v1184
        %v1435 = vadd.f32 %v499, %v1282
        %v1436 = vadd.f32 %v500, %v1380
        %v1437 = vadd.f32 %v501, %v1089
        %v1438 = vadd.f32 %v502, %v1187
        %v1439 = vadd.f32 %v503, %v1285
        %v1440 = vadd.f32 %v504, %v1383
        %v1441 = vadd.f32 %v505, %v1091
        %v1442 = vadd.f32 %v506, %v1189
        %v1443 = vadd.f32 %v507, %v1287
        %v1444 = vadd.f32 %v508, %v1385
        %v1445 = vadd.f32 %v509, %v1094
        %v1446 = vadd.f32 %v510, %v1192
        %v1447 = vadd.f32 %v511, %v1290
        %v1448 = vadd.f32 %v512, %v1388
        %v1449 = vadd.f32 %v513, %v1096
        %v1450 = vadd.f32 %v514, %v1194
        %v1451 = vadd.f32 %v515, %v1292
        %v1452 = vadd.f32 %v516, %v1390
        %v1453 = vadd.f32 %v517, %v1099
        %v1454 = vadd.f32 %v518, %v1197
        %v1455 = vadd.f32 %v519, %v1295
        %v1456 = vadd.f32 %v520, %v1393
        %v1457 = vadd.f32 %v521, %v1101
        %v1458 = vadd.f32 %v522, %v1199
        %v1459 = vadd.f32 %v523, %v1297
        %v1460 = vadd.f32 %v524, %v1395
        %1461 = vst [vmem:[#allocation2] sm:$0xff] %v1397
        %1462 = vst [vmem:[#allocation2 + $0x8] sm:$0xff] %v1398
        %1463 = vst [vmem:[#allocation2 + $0x10] sm:$0xff] %v1399
        %1464 = vst [vmem:[#allocation2 + $0x18] sm:$0xff] %v1400
        %1465 = vst [vmem:[#allocation2 + $0x20] sm:$0xff] %v1401
        %1466 = vst [vmem:[#allocation2 + $0x28] sm:$0xff] %v1402
        %1467 = vst [vmem:[#allocation2 + $0x30] sm:$0xff] %v1403
        %1468 = vst [vmem:[#allocation2 + $0x38] sm:$0xff] %v1404
        %1469 = vst [vmem:[#allocation2 + $0x40] sm:$0xff] %v1405
        %1470 = vst [vmem:[#allocation2 + $0x48] sm:$0xff] %v1406
        %1471 = vst [vmem:[#allocation2 + $0x50] sm:$0xff] %v1407
        %1472 = vst [vmem:[#allocation2 + $0x58] sm:$0xff] %v1408
        %1473 = vst [vmem:[#allocation2 + $0x60] sm:$0xff] %v1409
        %1474 = vst [vmem:[#allocation2 + $0x68] sm:$0xff] %v1410
        %1475 = vst [vmem:[#allocation2 + $0x70] sm:$0xff] %v1411
        %1476 = vst [vmem:[#allocation2 + $0x78] sm:$0xff] %v1412
        %1477 = vst [vmem:[#allocation2 + $0x80] sm:$0xff] %v1413
        %1478 = vst [vmem:[#allocation2 + $0x88] sm:$0xff] %v1414
        %1479 = vst [vmem:[#allocation2 + $0x90] sm:$0xff] %v1415
        %1480 = vst [vmem:[#allocation2 + $0x98] sm:$0xff] %v1416
        %1481 = vst [vmem:[#allocation2 + $0xa0] sm:$0xff] %v1417
        %1482 = vst [vmem:[#allocation2 + $0xa8] sm:$0xff] %v1418
        %1483 = vst [vmem:[#allocation2 + $0xb0] sm:$0xff] %v1419
        %1484 = vst [vmem:[#allocation2 + $0xb8] sm:$0xff] %v1420
        %1485 = vst [vmem:[#allocation2 + $0xc0] sm:$0xff] %v1421
        %1486 = vst [vmem:[#allocation2 + $0xc8] sm:$0xff] %v1422
        %1487 = vst [vmem:[#allocation2 + $0xd0] sm:$0xff] %v1423
        %1488 = vst [vmem:[#allocation2 + $0xd8] sm:$0xff] %v1424
        %1489 = vst [vmem:[#allocation2 + $0xe0] sm:$0xff] %v1425
        %1490 = vst [vmem:[#allocation2 + $0xe8] sm:$0xff] %v1426
        %1491 = vst [vmem:[#allocation2 + $0xf0] sm:$0xff] %v1427
        %1492 = vst [vmem:[#allocation2 + $0xf8] sm:$0xff] %v1428
        %1493 = vst [vmem:[#allocation2 + $0x100] sm:$0xff] %v1429
        %1494 = vst [vmem:[#allocation2 + $0x108] sm:$0xff] %v1430
        %1495 = vst [vmem:[#allocation2 + $0x110] sm:$0xff] %v1431
        %1496 = vst [vmem:[#allocation2 + $0x118] sm:$0xff] %v1432
        %1497 = vst [vmem:[#allocation2 + $0x120] sm:$0xff] %v1433
        %1498 = vst [vmem:[#allocation2 + $0x128] sm:$0xff] %v1434
        %1499 = vst [vmem:[#allocation2 + $0x130] sm:$0xff] %v1435
        %1500 = vst [vmem:[#allocation2 + $0x138] sm:$0xff] %v1436
        %1501 = vst [vmem:[#allocation2 + $0x140] sm:$0xff] %v1437
        %1502 = vst [vmem:[#allocation2 + $0x148] sm:$0xff] %v1438
        %1503 = vst [vmem:[#allocation2 + $0x150] sm:$0xff] %v1439
        %1504 = vst [vmem:[#allocation2 + $0x158] sm:$0xff] %v1440
        %1505 = vst [vmem:[#allocation2 + $0x160] sm:$0xff] %v1441
        %1506 = vst [vmem:[#allocation2 + $0x168] sm:$0xff] %v1442
        %1507 = vst [vmem:[#allocation2 + $0x170] sm:$0xff] %v1443
        %1508 = vst [vmem:[#allocation2 + $0x178] sm:$0xff] %v1444
        %1509 = vst [vmem:[#allocation2 + $0x180] sm:$0xff] %v1445
        %1510 = vst [vmem:[#allocation2 + $0x188] sm:$0xff] %v1446
        %1511 = vst [vmem:[#allocation2 + $0x190] sm:$0xff] %v1447
        %1512 = vst [vmem:[#allocation2 + $0x198] sm:$0xff] %v1448
        %1513 = vst [vmem:[#allocation2 + $0x1a0] sm:$0xff] %v1449
        %1514 = vst [vmem:[#allocation2 + $0x1a8] sm:$0xff] %v1450
        %1515 = vst [vmem:[#allocation2 + $0x1b0] sm:$0xff] %v1451
        %1516 = vst [vmem:[#allocation2 + $0x1b8] sm:$0xff] %v1452
        %1517 = vst [vmem:[#allocation2 + $0x1c0] sm:$0xff] %v1453
        %1518 = vst [vmem:[#allocation2 + $0x1c8] sm:$0xff] %v1454
        %1519 = vst [vmem:[#allocation2 + $0x1d0] sm:$0xff] %v1455
        %1520 = vst [vmem:[#allocation2 + $0x1d8] sm:$0xff] %v1456
        %1521 = vst [vmem:[#allocation2 + $0x1e0] sm:$0xff] %v1457
        %1522 = vst [vmem:[#allocation2 + $0x1e8] sm:$0xff] %v1458
        %1523 = vst [vmem:[#allocation2 + $0x1f0] sm:$0xff] %v1459
        %1524 = vst [vmem:[#allocation2 + $0x1f8] sm:$0xff] %v1460
        %p1525 = scmp.eq.s32.totalorder %s22, 2
        // Predicated region
        $region87: #{momi_forward.1} parent=77 // pred_check
          %p1526 = pneg %p1525
        $region88: #{momi_forward.1} parent=77 // pred_check_branch
          %1528 = sbr.rel (%p1526) target = $region90
        $region89: #{momi_forward.1} parent=77 // pred_region
          %v1529 = vld [vmem:[%s5] sm:$0x77]
          %v1530 = vld [vmem:[%s5 + $0x8] sm:$0x77]
          %v1531 = vld [vmem:[#allocation2] sm:$0xff]
          %v1532 = vld [vmem:[#allocation2 + $0x8] sm:$0xff]
          %v1533 = vld [vmem:[#allocation2 + $0x10] sm:$0xff]
          %v1534 = vld [vmem:[#allocation2 + $0x18] sm:$0xff]
          %v1535 = vld [vmem:[#allocation2 + $0x20] sm:$0xff]
          %v1536 = vld [vmem:[#allocation2 + $0x28] sm:$0xff]
          %v1537 = vld [vmem:[#allocation2 + $0x30] sm:$0xff]
          %v1538 = vld [vmem:[#allocation2 + $0x38] sm:$0xff]
          %v1539 = vld [vmem:[#allocation2 + $0x40] sm:$0xff]
          %v1540 = vld [vmem:[#allocation2 + $0x48] sm:$0xff]
          %v1541 = vld [vmem:[#allocation2 + $0x50] sm:$0xff]
          %v1542 = vld [vmem:[#allocation2 + $0x58] sm:$0xff]
          %v1543 = vld [vmem:[#allocation2 + $0x60] sm:$0xff]
          %v1544 = vld [vmem:[#allocation2 + $0x68] sm:$0xff]
          %v1545 = vld [vmem:[#allocation2 + $0x70] sm:$0xff]
          %v1546 = vld [vmem:[#allocation2 + $0x78] sm:$0xff]
          %v1547 = vld [vmem:[#allocation2 + $0x80] sm:$0xff]
          %v1548 = vld [vmem:[#allocation2 + $0x88] sm:$0xff]
          %v1549 = vld [vmem:[#allocation2 + $0x90] sm:$0xff]
          %v1550 = vld [vmem:[#allocation2 + $0x98] sm:$0xff]
          %v1551 = vld [vmem:[#allocation2 + $0xa0] sm:$0xff]
          %v1552 = vld [vmem:[#allocation2 + $0xa8] sm:$0xff]
          %v1553 = vld [vmem:[#allocation2 + $0xb0] sm:$0xff]
          %v1554 = vld [vmem:[#allocation2 + $0xb8] sm:$0xff]
          %v1555 = vld [vmem:[#allocation2 + $0xc0] sm:$0xff]
          %v1556 = vld [vmem:[#allocation2 + $0xc8] sm:$0xff]
          %v1557 = vld [vmem:[#allocation2 + $0xd0] sm:$0xff]
          %v1558 = vld [vmem:[#allocation2 + $0xd8] sm:$0xff]
          %v1559 = vld [vmem:[#allocation2 + $0xe0] sm:$0xff]
          %v1560 = vld [vmem:[#allocation2 + $0xe8] sm:$0xff]
          %v1561 = vld [vmem:[#allocation2 + $0xf0] sm:$0xff]
          %v1562 = vld [vmem:[#allocation2 + $0xf8] sm:$0xff]
          %v1563 = vld [vmem:[#allocation2 + $0x100] sm:$0xff]
          %v1564 = vld [vmem:[#allocation2 + $0x108] sm:$0xff]
          %v1565 = vld [vmem:[#allocation2 + $0x110] sm:$0xff]
          %v1566 = vld [vmem:[#allocation2 + $0x118] sm:$0xff]
          %v1567 = vld [vmem:[#allocation2 + $0x120] sm:$0xff]
          %v1568 = vld [vmem:[#allocation2 + $0x128] sm:$0xff]
          %v1569 = vld [vmem:[#allocation2 + $0x130] sm:$0xff]
          %v1570 = vld [vmem:[#allocation2 + $0x138] sm:$0xff]
          %v1571 = vld [vmem:[#allocation2 + $0x140] sm:$0xff]
          %v1572 = vld [vmem:[#allocation2 + $0x148] sm:$0xff]
          %v1573 = vld [vmem:[#allocation2 + $0x150] sm:$0xff]
          %v1574 = vld [vmem:[#allocation2 + $0x158] sm:$0xff]
          %v1575 = vld [vmem:[#allocation2 + $0x160] sm:$0xff]
          %v1576 = vld [vmem:[#allocation2 + $0x168] sm:$0xff]
          %v1577 = vld [vmem:[#allocation2 + $0x170] sm:$0xff]
          %v1578 = vld [vmem:[#allocation2 + $0x178] sm:$0xff]
          %v1579 = vld [vmem:[#allocation2 + $0x180] sm:$0xff]
          %v1580 = vld [vmem:[#allocation2 + $0x188] sm:$0xff]
          %v1581 = vld [vmem:[#allocation2 + $0x190] sm:$0xff]
          %v1582 = vld [vmem:[#allocation2 + $0x198] sm:$0xff]
          %v1583 = vld [vmem:[#allocation2 + $0x1a0] sm:$0xff]
          %v1584 = vld [vmem:[#allocation2 + $0x1a8] sm:$0xff]
          %v1585 = vld [vmem:[#allocation2 + $0x1b0] sm:$0xff]
          %v1586 = vld [vmem:[#allocation2 + $0x1b8] sm:$0xff]
          %v1587 = vld [vmem:[#allocation2 + $0x1c0] sm:$0xff]
          %v1588 = vld [vmem:[#allocation2 + $0x1c8] sm:$0xff]
          %v1589 = vld [vmem:[#allocation2 + $0x1d0] sm:$0xff]
          %v1590 = vld [vmem:[#allocation2 + $0x1d8] sm:$0xff]
          %v1591 = vld [vmem:[#allocation2 + $0x1e0] sm:$0xff]
          %v1592 = vld [vmem:[#allocation2 + $0x1e8] sm:$0xff]
          %v1593 = vld [vmem:[#allocation2 + $0x1f0] sm:$0xff]
          %v1594 = vld [vmem:[#allocation2 + $0x1f8] sm:$0xff]
          %v1597 = vperm.slane %v1529, 0
          %v1598 = vperm.slane %v1529, 4
          %v1599 = vperm.slane %v1530, 0
          %v1600 = vperm.slane %v1530, 4
          %v1605 = vperm.slane %v1597, 0
          %v1606 = vperm.slane %v1598, 0
          %v1607 = vperm.slane %v1599, 0
          %v1608 = vperm.slane %v1600, 0
          %v1609 = vadd.f32 %v1531, %v1605
          %v1610 = vadd.f32 %v1532, %v1606
          %v1611 = vadd.f32 %v1533, %v1607
          %v1612 = vadd.f32 %v1534, %v1608
          %v1613 = vadd.f32 %v1535, %v1605
          %v1614 = vadd.f32 %v1536, %v1606
          %v1615 = vadd.f32 %v1537, %v1607
          %v1616 = vadd.f32 %v1538, %v1608
          %v1617 = vadd.f32 %v1539, %v1605
          %v1618 = vadd.f32 %v1540, %v1606
          %v1619 = vadd.f32 %v1541, %v1607
          %v1620 = vadd.f32 %v1542, %v1608
          %v1621 = vadd.f32 %v1543, %v1605
          %v1622 = vadd.f32 %v1544, %v1606
          %v1623 = vadd.f32 %v1545, %v1607
          %v1624 = vadd.f32 %v1546, %v1608
          %v1625 = vadd.f32 %v1547, %v1605
          %v1626 = vadd.f32 %v1548, %v1606
          %v1627 = vadd.f32 %v1549, %v1607
          %v1628 = vadd.f32 %v1550, %v1608
          %v1629 = vadd.f32 %v1551, %v1605
          %v1630 = vadd.f32 %v1552, %v1606
          %v1631 = vadd.f32 %v1553, %v1607
          %v1632 = vadd.f32 %v1554, %v1608
          %v1633 = vadd.f32 %v1555, %v1605
          %v1634 = vadd.f32 %v1556, %v1606
          %v1635 = vadd.f32 %v1557, %v1607
          %v1636 = vadd.f32 %v1558, %v1608
          %v1637 = vadd.f32 %v1559, %v1605
          %v1638 = vadd.f32 %v1560, %v1606
          %v1639 = vadd.f32 %v1561, %v1607
          %v1640 = vadd.f32 %v1562, %v1608
          %v1641 = vadd.f32 %v1563, %v1605
          %v1642 = vadd.f32 %v1564, %v1606
          %v1643 = vadd.f32 %v1565, %v1607
          %v1644 = vadd.f32 %v1566, %v1608
          %v1645 = vadd.f32 %v1567, %v1605
          %v1646 = vadd.f32 %v1568, %v1606
          %v1647 = vadd.f32 %v1569, %v1607
          %v1648 = vadd.f32 %v1570, %v1608
          %v1649 = vadd.f32 %v1571, %v1605
          %v1650 = vadd.f32 %v1572, %v1606
          %v1651 = vadd.f32 %v1573, %v1607
          %v1652 = vadd.f32 %v1574, %v1608
          %v1653 = vadd.f32 %v1575, %v1605
          %v1654 = vadd.f32 %v1576, %v1606
          %v1655 = vadd.f32 %v1577, %v1607
          %v1656 = vadd.f32 %v1578, %v1608
          %v1657 = vadd.f32 %v1579, %v1605
          %v1658 = vadd.f32 %v1580, %v1606
          %v1659 = vadd.f32 %v1581, %v1607
          %v1660 = vadd.f32 %v1582, %v1608
          %v1661 = vadd.f32 %v1583, %v1605
          %v1662 = vadd.f32 %v1584, %v1606
          %v1663 = vadd.f32 %v1585, %v1607
          %v1664 = vadd.f32 %v1586, %v1608
          %v1665 = vadd.f32 %v1587, %v1605
          %v1666 = vadd.f32 %v1588, %v1606
          %v1667 = vadd.f32 %v1589, %v1607
          %v1668 = vadd.f32 %v1590, %v1608
          %v1669 = vadd.f32 %v1591, %v1605
          %v1670 = vadd.f32 %v1592, %v1606
          %v1671 = vadd.f32 %v1593, %v1607
          %v1672 = vadd.f32 %v1594, %v1608
          %v1673 = vmax.f32 %v1609, 0.0
          %v1674 = vmax.f32 %v1610, 0.0
          %v1675 = vmax.f32 %v1611, 0.0
          %v1676 = vmax.f32 %v1612, 0.0
          %v1677 = vmax.f32 %v1613, 0.0
          %v1678 = vmax.f32 %v1614, 0.0
          %v1679 = vmax.f32 %v1615, 0.0
          %v1680 = vmax.f32 %v1616, 0.0
          %v1681 = vmax.f32 %v1617, 0.0
          %v1682 = vmax.f32 %v1618, 0.0
          %v1683 = vmax.f32 %v1619, 0.0
          %v1684 = vmax.f32 %v1620, 0.0
          %v1685 = vmax.f32 %v1621, 0.0
          %v1686 = vmax.f32 %v1622, 0.0
          %v1687 = vmax.f32 %v1623, 0.0
          %v1688 = vmax.f32 %v1624, 0.0
          %v1689 = vmax.f32 %v1625, 0.0
          %v1690 = vmax.f32 %v1626, 0.0
          %v1691 = vmax.f32 %v1627, 0.0
          %v1692 = vmax.f32 %v1628, 0.0
          %v1693 = vmax.f32 %v1629, 0.0
          %v1694 = vmax.f32 %v1630, 0.0
          %v1695 = vmax.f32 %v1631, 0.0
          %v1696 = vmax.f32 %v1632, 0.0
          %v1697 = vmax.f32 %v1633, 0.0
          %v1698 = vmax.f32 %v1634, 0.0
          %v1699 = vmax.f32 %v1635, 0.0
          %v1700 = vmax.f32 %v1636, 0.0
          %v1701 = vmax.f32 %v1637, 0.0
          %v1702 = vmax.f32 %v1638, 0.0
          %v1703 = vmax.f32 %v1639, 0.0
          %v1704 = vmax.f32 %v1640, 0.0
          %v1705 = vmax.f32 %v1641, 0.0
          %v1706 = vmax.f32 %v1642, 0.0
          %v1707 = vmax.f32 %v1643, 0.0
          %v1708 = vmax.f32 %v1644, 0.0
          %v1709 = vmax.f32 %v1645, 0.0
          %v1710 = vmax.f32 %v1646, 0.0
          %v1711 = vmax.f32 %v1647, 0.0
          %v1712 = vmax.f32 %v1648, 0.0
          %v1713 = vmax.f32 %v1649, 0.0
          %v1714 = vmax.f32 %v1650, 0.0
          %v1715 = vmax.f32 %v1651, 0.0
          %v1716 = vmax.f32 %v1652, 0.0
          %v1717 = vmax.f32 %v1653, 0.0
          %v1718 = vmax.f32 %v1654, 0.0
          %v1719 = vmax.f32 %v1655, 0.0
          %v1720 = vmax.f32 %v1656, 0.0
          %v1721 = vmax.f32 %v1657, 0.0
          %v1722 = vmax.f32 %v1658, 0.0
          %v1723 = vmax.f32 %v1659, 0.0
          %v1724 = vmax.f32 %v1660, 0.0
          %v1725 = vmax.f32 %v1661, 0.0
          %v1726 = vmax.f32 %v1662, 0.0
          %v1727 = vmax.f32 %v1663, 0.0
          %v1728 = vmax.f32 %v1664, 0.0
          %v1729 = vmax.f32 %v1665, 0.0
          %v1730 = vmax.f32 %v1666, 0.0
          %v1731 = vmax.f32 %v1667, 0.0
          %v1732 = vmax.f32 %v1668, 0.0
          %v1733 = vmax.f32 %v1669, 0.0
          %v1734 = vmax.f32 %v1670, 0.0
          %v1735 = vmax.f32 %v1671, 0.0
          %v1736 = vmax.f32 %v1672, 0.0
          %v1737 = vpack.c.bf16 %v1677, %v1673
          %v1738 = vpack.c.bf16 %v1678, %v1674
          %v1739 = vpack.c.bf16 %v1685, %v1681
          %v1740 = vpack.c.bf16 %v1686, %v1682
          %v1741 = vpack.c.bf16 %v1693, %v1689
          %v1742 = vpack.c.bf16 %v1694, %v1690
          %v1743 = vpack.c.bf16 %v1701, %v1697
          %v1744 = vpack.c.bf16 %v1702, %v1698
          %v1745 = vpack.c.bf16 %v1709, %v1705
          %v1746 = vpack.c.bf16 %v1710, %v1706
          %v1747 = vpack.c.bf16 %v1717, %v1713
          %v1748 = vpack.c.bf16 %v1718, %v1714
          %v1749 = vpack.c.bf16 %v1725, %v1721
          %v1750 = vpack.c.bf16 %v1726, %v1722
          %v1751 = vpack.c.bf16 %v1733, %v1729
          %v1752 = vpack.c.bf16 %v1734, %v1730
          %v1753 = vpack.c.bf16 %v1679, %v1675
          %v1754 = vpack.c.bf16 %v1680, %v1676
          %v1755 = vpack.c.bf16 %v1687, %v1683
          %v1756 = vpack.c.bf16 %v1688, %v1684
          %v1757 = vpack.c.bf16 %v1695, %v1691
          %v1758 = vpack.c.bf16 %v1696, %v1692
          %v1759 = vpack.c.bf16 %v1703, %v1699
          %v1760 = vpack.c.bf16 %v1704, %v1700
          %v1761 = vpack.c.bf16 %v1711, %v1707
          %v1762 = vpack.c.bf16 %v1712, %v1708
          %v1763 = vpack.c.bf16 %v1719, %v1715
          %v1764 = vpack.c.bf16 %v1720, %v1716
          %v1765 = vpack.c.bf16 %v1727, %v1723
          %v1766 = vpack.c.bf16 %v1728, %v1724
          %v1767 = vpack.c.bf16 %v1735, %v1731
          %v1768 = vpack.c.bf16 %v1736, %v1732
          %v1769 = vld [vmem:[%s2] sm:$0xf]
          %v1770 = vld [vmem:[%s2 + $0x4] sm:$0xf]
          %v1771 = vld [vmem:[%s2 + $0x8] sm:$0xf]
          %v1772 = vld [vmem:[%s2 + $0xc] sm:$0xf]
          %v1773 = vld [vmem:[%s2 + $0x10] sm:$0xf]
          %v1774 = vld [vmem:[%s2 + $0x14] sm:$0xf]
          %v1775 = vld [vmem:[%s2 + $0x18] sm:$0xf]
          %v1776 = vld [vmem:[%s2 + $0x1c] sm:$0xf]
          %v1777 = vld [vmem:[%s2 + $0x20] sm:$0xf]
          %v1778 = vld [vmem:[%s2 + $0x24] sm:$0xf]
          %v1779 = vld [vmem:[%s2 + $0x28] sm:$0xf]
          %v1780 = vld [vmem:[%s2 + $0x2c] sm:$0xf]
          %v1781 = vld [vmem:[%s2 + $0x30] sm:$0xf]
          %v1782 = vld [vmem:[%s2 + $0x34] sm:$0xf]
          %v1783 = vld [vmem:[%s2 + $0x38] sm:$0xf]
          %v1784 = vld [vmem:[%s2 + $0x3c] sm:$0xf]
          %v1785 = vld [vmem:[%s2 + $0x40] sm:$0xf]
          %v1786 = vld [vmem:[%s2 + $0x44] sm:$0xf]
          %v1787 = vld [vmem:[%s2 + $0x48] sm:$0xf]
          %v1788 = vld [vmem:[%s2 + $0x4c] sm:$0xf]
          %v1789 = vld [vmem:[%s2 + $0x50] sm:$0xf]
          %v1790 = vld [vmem:[%s2 + $0x54] sm:$0xf]
          %v1791 = vld [vmem:[%s2 + $0x58] sm:$0xf]
          %v1792 = vld [vmem:[%s2 + $0x5c] sm:$0xf]
          %v1793 = vld [vmem:[%s2 + $0x60] sm:$0xf]
          %v1794 = vld [vmem:[%s2 + $0x64] sm:$0xf]
          %v1795 = vld [vmem:[%s2 + $0x68] sm:$0xf]
          %v1796 = vld [vmem:[%s2 + $0x6c] sm:$0xf]
          %v1797 = vld [vmem:[%s2 + $0x70] sm:$0xf]
          %v1798 = vld [vmem:[%s2 + $0x74] sm:$0xf]
          %v1799 = vld [vmem:[%s2 + $0x78] sm:$0xf]
          %v1800 = vld [vmem:[%s2 + $0x7c] sm:$0xf]
          %v1801 = vperm.slane %v1529, 1
          %v1834 = vunpack.c.l.b16 %v1769
          %v1835 = vunpack.c.l.b16 %v1770
          %v1836 = vunpack.c.l.b16 %v1771
          %v1837 = vunpack.c.l.b16 %v1772
          %v1838 = vunpack.c.l.b16 %v1773
          %v1839 = vunpack.c.l.b16 %v1774
          %v1840 = vunpack.c.l.b16 %v1775
          %v1841 = vunpack.c.l.b16 %v1776
          %v1842 = vunpack.c.l.b16 %v1777
          %v1843 = vunpack.c.l.b16 %v1778
          %v1844 = vunpack.c.l.b16 %v1779
          %v1845 = vunpack.c.l.b16 %v1780
          %v1846 = vunpack.c.l.b16 %v1781
          %v1847 = vunpack.c.l.b16 %v1782
          %v1848 = vunpack.c.l.b16 %v1783
          %v1849 = vunpack.c.l.b16 %v1784
          %v1850 = vunpack.c.l.b16 %v1785
          %v1851 = vunpack.c.l.b16 %v1786
          %v1852 = vunpack.c.l.b16 %v1787
          %v1853 = vunpack.c.l.b16 %v1788
          %v1854 = vunpack.c.l.b16 %v1789
          %v1855 = vunpack.c.l.b16 %v1790
          %v1856 = vunpack.c.l.b16 %v1791
          %v1857 = vunpack.c.l.b16 %v1792
          %v1858 = vunpack.c.l.b16 %v1793
          %v1859 = vunpack.c.l.b16 %v1794
          %v1860 = vunpack.c.l.b16 %v1795
          %v1861 = vunpack.c.l.b16 %v1796
          %v1862 = vunpack.c.l.b16 %v1797
          %v1863 = vunpack.c.l.b16 %v1798
          %v1864 = vunpack.c.l.b16 %v1799
          %v1865 = vunpack.c.l.b16 %v1800
          %v1866 = vpack.c.b16 %v1835, %v1834
          %v1867 = vpack.c.b16 %v1837, %v1836
          %v1868 = vpack.c.b16 %v1839, %v1838
          %v1869 = vpack.c.b16 %v1841, %v1840
          %v1870 = vpack.c.b16 %v1843, %v1842
          %v1871 = vpack.c.b16 %v1845, %v1844
          %v1872 = vpack.c.b16 %v1847, %v1846
          %v1873 = vpack.c.b16 %v1849, %v1848
          %v1874 = vpack.c.b16 %v1851, %v1850
          %v1875 = vpack.c.b16 %v1853, %v1852
          %v1876 = vpack.c.b16 %v1855, %v1854
          %v1877 = vpack.c.b16 %v1857, %v1856
          %v1878 = vpack.c.b16 %v1859, %v1858
          %v1879 = vpack.c.b16 %v1861, %v1860
          %v1880 = vpack.c.b16 %v1863, %v1862
          %v1881 = vpack.c.b16 %v1865, %v1864
          %1898 = vmatpush.bf16.msra.mxu0 %v1873
          %1899 = vmatpush.bf16.msra.mxu0 %v1872
          %1900 = vmatpush.bf16.msra.mxu0 %v1871
          %1901 = vmatpush.bf16.msra.mxu0 %v1870
          %1902 = vmatpush.bf16.msra.mxu0 %v1869
          %1903 = vmatpush.bf16.msra.mxu0 %v1868
          %1904 = vmatpush.bf16.msra.mxu0 %v1867
          %1905 = vmatpush.bf16.msra.mxu0 %v1866
          %1906 = vmatmul.bf16.gmra.mxu0 %v1737
          %v1907 = vpop.f32.mrf.mxu0
          %v1908 = vadd.f32 %v1801, %v1907
          %v1909 = vpop.f32.mrf.mxu0
          %v1910 = vadd.f32 %v1801, %v1909
          %1911 = vmatmul.bf16.gmra.mxu0 %v1739
          %v1912 = vpop.f32.mrf.mxu0
          %v1913 = vadd.f32 %v1801, %v1912
          %v1914 = vpop.f32.mrf.mxu0
          %v1915 = vadd.f32 %v1801, %v1914
          %1916 = vmatmul.bf16.gmra.mxu0 %v1741
          %v1917 = vpop.f32.mrf.mxu0
          %v1918 = vadd.f32 %v1801, %v1917
          %v1919 = vpop.f32.mrf.mxu0
          %v1920 = vadd.f32 %v1801, %v1919
          %1921 = vmatmul.bf16.gmra.mxu0 %v1743
          %v1922 = vpop.f32.mrf.mxu0
          %v1923 = vadd.f32 %v1801, %v1922
          %v1924 = vpop.f32.mrf.mxu0
          %v1925 = vadd.f32 %v1801, %v1924
          %1926 = vmatmul.bf16.gmra.mxu0 %v1745
          %v1927 = vpop.f32.mrf.mxu0
          %v1928 = vadd.f32 %v1801, %v1927
          %v1929 = vpop.f32.mrf.mxu0
          %v1930 = vadd.f32 %v1801, %v1929
          %1931 = vmatmul.bf16.gmra.mxu0 %v1747
          %v1932 = vpop.f32.mrf.mxu0
          %v1933 = vadd.f32 %v1801, %v1932
          %v1934 = vpop.f32.mrf.mxu0
          %v1935 = vadd.f32 %v1801, %v1934
          %1936 = vmatmul.bf16.gmra.mxu0 %v1749
          %v1937 = vpop.f32.mrf.mxu0
          %v1938 = vadd.f32 %v1801, %v1937
          %v1939 = vpop.f32.mrf.mxu0
          %v1940 = vadd.f32 %v1801, %v1939
          %1941 = vmatmul.bf16.gmra.mxu0 %v1751
          %v1942 = vpop.f32.mrf.mxu0
          %v1943 = vadd.f32 %v1801, %v1942
          %v1944 = vpop.f32.mrf.mxu0
          %v1945 = vadd.f32 %v1801, %v1944
          %1946 = vdwg.mxu0
          %1947 = vmatpush.bf16.msra.mxu0 %v1881
          %1948 = vmatpush.bf16.msra.mxu0 %v1880
          %1949 = vmatpush.bf16.msra.mxu0 %v1879
          %1950 = vmatpush.bf16.msra.mxu0 %v1878
          %1951 = vmatpush.bf16.msra.mxu0 %v1877
          %1952 = vmatpush.bf16.msra.mxu0 %v1876
          %1953 = vmatpush.bf16.msra.mxu0 %v1875
          %1954 = vmatpush.bf16.msra.mxu0 %v1874
          %1955 = vmatmul.bf16.gmra.mxu0 %v1738
          %v1956 = vpop.f32.mrf.mxu0
          %v1957 = vadd.f32 %v1908, %v1956
          %v1958 = vpop.f32.mrf.mxu0
          %v1959 = vadd.f32 %v1910, %v1958
          %1960 = vmatmul.bf16.gmra.mxu0 %v1740
          %v1961 = vpop.f32.mrf.mxu0
          %v1962 = vadd.f32 %v1913, %v1961
          %v1963 = vpop.f32.mrf.mxu0
          %v1964 = vadd.f32 %v1915, %v1963
          %1965 = vmatmul.bf16.gmra.mxu0 %v1742
          %v1966 = vpop.f32.mrf.mxu0
          %v1967 = vadd.f32 %v1918, %v1966
          %v1968 = vpop.f32.mrf.mxu0
          %v1969 = vadd.f32 %v1920, %v1968
          %1970 = vmatmul.bf16.gmra.mxu0 %v1744
          %v1971 = vpop.f32.mrf.mxu0
          %v1972 = vadd.f32 %v1923, %v1971
          %v1973 = vpop.f32.mrf.mxu0
          %v1974 = vadd.f32 %v1925, %v1973
          %1975 = vmatmul.bf16.gmra.mxu0 %v1746
          %v1976 = vpop.f32.mrf.mxu0
          %v1977 = vadd.f32 %v1928, %v1976
          %v1978 = vpop.f32.mrf.mxu0
          %v1979 = vadd.f32 %v1930, %v1978
          %1980 = vmatmul.bf16.gmra.mxu0 %v1748
          %v1981 = vpop.f32.mrf.mxu0
          %v1982 = vadd.f32 %v1933, %v1981
          %v1983 = vpop.f32.mrf.mxu0
          %v1984 = vadd.f32 %v1935, %v1983
          %1985 = vmatmul.bf16.gmra.mxu0 %v1750
          %v1986 = vpop.f32.mrf.mxu0
          %v1987 = vadd.f32 %v1938, %v1986
          %v1988 = vpop.f32.mrf.mxu0
          %v1989 = vadd.f32 %v1940, %v1988
          %1990 = vmatmul.bf16.gmra.mxu0 %v1752
          %v1991 = vpop.f32.mrf.mxu0
          %v1992 = vadd.f32 %v1943, %v1991
          %v1993 = vpop.f32.mrf.mxu0
          %v1994 = vadd.f32 %v1945, %v1993
          %1995 = vdwg.mxu0
          %v1996 = vmax.f32 %v1957, 0.0
          %v1997 = vmax.f32 %v1959, 0.0
          %v1998 = vmax.f32 %v1962, 0.0
          %v1999 = vmax.f32 %v1964, 0.0
          %v2000 = vmax.f32 %v1967, 0.0
          %v2001 = vmax.f32 %v1969, 0.0
          %v2002 = vmax.f32 %v1972, 0.0
          %v2003 = vmax.f32 %v1974, 0.0
          %v2004 = vmax.f32 %v1977, 0.0
          %v2005 = vmax.f32 %v1979, 0.0
          %v2006 = vmax.f32 %v1982, 0.0
          %v2007 = vmax.f32 %v1984, 0.0
          %v2008 = vmax.f32 %v1987, 0.0
          %v2009 = vmax.f32 %v1989, 0.0
          %v2010 = vmax.f32 %v1992, 0.0
          %v2011 = vmax.f32 %v1994, 0.0
          %v2012 = vld [vmem:[%s3] sm:$0xf]
          %v2013 = vld [vmem:[%s3 + $0x4] sm:$0xf]
          %v2014 = vld [vmem:[%s3 + $0x8] sm:$0xf]
          %v2015 = vld [vmem:[%s3 + $0xc] sm:$0xf]
          %v2016 = vld [vmem:[%s3 + $0x10] sm:$0xf]
          %v2017 = vld [vmem:[%s3 + $0x14] sm:$0xf]
          %v2018 = vld [vmem:[%s3 + $0x18] sm:$0xf]
          %v2019 = vld [vmem:[%s3 + $0x1c] sm:$0xf]
          %v2020 = vld [vmem:[%s3 + $0x20] sm:$0xf]
          %v2021 = vld [vmem:[%s3 + $0x24] sm:$0xf]
          %v2022 = vld [vmem:[%s3 + $0x28] sm:$0xf]
          %v2023 = vld [vmem:[%s3 + $0x2c] sm:$0xf]
          %v2024 = vld [vmem:[%s3 + $0x30] sm:$0xf]
          %v2025 = vld [vmem:[%s3 + $0x34] sm:$0xf]
          %v2026 = vld [vmem:[%s3 + $0x38] sm:$0xf]
          %v2027 = vld [vmem:[%s3 + $0x3c] sm:$0xf]
          %v2028 = vld [vmem:[%s3 + $0x40] sm:$0xf]
          %v2029 = vld [vmem:[%s3 + $0x44] sm:$0xf]
          %v2030 = vld [vmem:[%s3 + $0x48] sm:$0xf]
          %v2031 = vld [vmem:[%s3 + $0x4c] sm:$0xf]
          %v2032 = vld [vmem:[%s3 + $0x50] sm:$0xf]
          %v2033 = vld [vmem:[%s3 + $0x54] sm:$0xf]
          %v2034 = vld [vmem:[%s3 + $0x58] sm:$0xf]
          %v2035 = vld [vmem:[%s3 + $0x5c] sm:$0xf]
          %v2036 = vld [vmem:[%s3 + $0x60] sm:$0xf]
          %v2037 = vld [vmem:[%s3 + $0x64] sm:$0xf]
          %v2038 = vld [vmem:[%s3 + $0x68] sm:$0xf]
          %v2039 = vld [vmem:[%s3 + $0x6c] sm:$0xf]
          %v2040 = vld [vmem:[%s3 + $0x70] sm:$0xf]
          %v2041 = vld [vmem:[%s3 + $0x74] sm:$0xf]
          %v2042 = vld [vmem:[%s3 + $0x78] sm:$0xf]
          %v2043 = vld [vmem:[%s3 + $0x7c] sm:$0xf]
          %v2044 = vrot.slane %v1529, 4
          %v2046 = vperm.slane %v2044, 1
          %v2079 = vunpack.c.l.b16 %v2012
          %v2080 = vunpack.c.l.b16 %v2013
          %v2081 = vunpack.c.l.b16 %v2014
          %v2082 = vunpack.c.l.b16 %v2015
          %v2083 = vunpack.c.l.b16 %v2016
          %v2084 = vunpack.c.l.b16 %v2017
          %v2085 = vunpack.c.l.b16 %v2018
          %v2086 = vunpack.c.l.b16 %v2019
          %v2087 = vunpack.c.l.b16 %v2020
          %v2088 = vunpack.c.l.b16 %v2021
          %v2089 = vunpack.c.l.b16 %v2022
          %v2090 = vunpack.c.l.b16 %v2023
          %v2091 = vunpack.c.l.b16 %v2024
          %v2092 = vunpack.c.l.b16 %v2025
          %v2093 = vunpack.c.l.b16 %v2026
          %v2094 = vunpack.c.l.b16 %v2027
          %v2095 = vunpack.c.l.b16 %v2028
          %v2096 = vunpack.c.l.b16 %v2029
          %v2097 = vunpack.c.l.b16 %v2030
          %v2098 = vunpack.c.l.b16 %v2031
          %v2099 = vunpack.c.l.b16 %v2032
          %v2100 = vunpack.c.l.b16 %v2033
          %v2101 = vunpack.c.l.b16 %v2034
          %v2102 = vunpack.c.l.b16 %v2035
          %v2103 = vunpack.c.l.b16 %v2036
          %v2104 = vunpack.c.l.b16 %v2037
          %v2105 = vunpack.c.l.b16 %v2038
          %v2106 = vunpack.c.l.b16 %v2039
          %v2107 = vunpack.c.l.b16 %v2040
          %v2108 = vunpack.c.l.b16 %v2041
          %v2109 = vunpack.c.l.b16 %v2042
          %v2110 = vunpack.c.l.b16 %v2043
          %v2111 = vpack.c.b16 %v2080, %v2079
          %v2112 = vpack.c.b16 %v2082, %v2081
          %v2113 = vpack.c.b16 %v2084, %v2083
          %v2114 = vpack.c.b16 %v2086, %v2085
          %v2115 = vpack.c.b16 %v2088, %v2087
          %v2116 = vpack.c.b16 %v2090, %v2089
          %v2117 = vpack.c.b16 %v2092, %v2091
          %v2118 = vpack.c.b16 %v2094, %v2093
          %v2119 = vpack.c.b16 %v2096, %v2095
          %v2120 = vpack.c.b16 %v2098, %v2097
          %v2121 = vpack.c.b16 %v2100, %v2099
          %v2122 = vpack.c.b16 %v2102, %v2101
          %v2123 = vpack.c.b16 %v2104, %v2103
          %v2124 = vpack.c.b16 %v2106, %v2105
          %v2125 = vpack.c.b16 %v2108, %v2107
          %v2126 = vpack.c.b16 %v2110, %v2109
          %2143 = vmatpush.bf16.msra.mxu0 %v2118
          %2144 = vmatpush.bf16.msra.mxu0 %v2117
          %2145 = vmatpush.bf16.msra.mxu0 %v2116
          %2146 = vmatpush.bf16.msra.mxu0 %v2115
          %2147 = vmatpush.bf16.msra.mxu0 %v2114
          %2148 = vmatpush.bf16.msra.mxu0 %v2113
          %2149 = vmatpush.bf16.msra.mxu0 %v2112
          %2150 = vmatpush.bf16.msra.mxu0 %v2111
          %2151 = vmatmul.bf16.gmra.mxu0 %v1753
          %v2152 = vpop.f32.mrf.mxu0
          %v2153 = vadd.f32 %v2046, %v2152
          %v2154 = vpop.f32.mrf.mxu0
          %v2155 = vadd.f32 %v2046, %v2154
          %2156 = vmatmul.bf16.gmra.mxu0 %v1755
          %v2157 = vpop.f32.mrf.mxu0
          %v2158 = vadd.f32 %v2046, %v2157
          %v2159 = vpop.f32.mrf.mxu0
          %v2160 = vadd.f32 %v2046, %v2159
          %2161 = vmatmul.bf16.gmra.mxu0 %v1757
          %v2162 = vpop.f32.mrf.mxu0
          %v2163 = vadd.f32 %v2046, %v2162
          %v2164 = vpop.f32.mrf.mxu0
          %v2165 = vadd.f32 %v2046, %v2164
          %2166 = vmatmul.bf16.gmra.mxu0 %v1759
          %v2167 = vpop.f32.mrf.mxu0
          %v2168 = vadd.f32 %v2046, %v2167
          %v2169 = vpop.f32.mrf.mxu0
          %v2170 = vadd.f32 %v2046, %v2169
          %2171 = vmatmul.bf16.gmra.mxu0 %v1761
          %v2172 = vpop.f32.mrf.mxu0
          %v2173 = vadd.f32 %v2046, %v2172
          %v2174 = vpop.f32.mrf.mxu0
          %v2175 = vadd.f32 %v2046, %v2174
          %2176 = vmatmul.bf16.gmra.mxu0 %v1763
          %v2177 = vpop.f32.mrf.mxu0
          %v2178 = vadd.f32 %v2046, %v2177
          %v2179 = vpop.f32.mrf.mxu0
          %v2180 = vadd.f32 %v2046, %v2179
          %2181 = vmatmul.bf16.gmra.mxu0 %v1765
          %v2182 = vpop.f32.mrf.mxu0
          %v2183 = vadd.f32 %v2046, %v2182
          %v2184 = vpop.f32.mrf.mxu0
          %v2185 = vadd.f32 %v2046, %v2184
          %2186 = vmatmul.bf16.gmra.mxu0 %v1767
          %v2187 = vpop.f32.mrf.mxu0
          %v2188 = vadd.f32 %v2046, %v2187
          %v2189 = vpop.f32.mrf.mxu0
          %v2190 = vadd.f32 %v2046, %v2189
          %2191 = vdwg.mxu0
          %2192 = vmatpush.bf16.msra.mxu0 %v2126
          %2193 = vmatpush.bf16.msra.mxu0 %v2125
          %2194 = vmatpush.bf16.msra.mxu0 %v2124
          %2195 = vmatpush.bf16.msra.mxu0 %v2123
          %2196 = vmatpush.bf16.msra.mxu0 %v2122
          %2197 = vmatpush.bf16.msra.mxu0 %v2121
          %2198 = vmatpush.bf16.msra.mxu0 %v2120
          %2199 = vmatpush.bf16.msra.mxu0 %v2119
          %2200 = vmatmul.bf16.gmra.mxu0 %v1754
          %v2201 = vpop.f32.mrf.mxu0
          %v2202 = vadd.f32 %v2153, %v2201
          %v2203 = vpop.f32.mrf.mxu0
          %v2204 = vadd.f32 %v2155, %v2203
          %2205 = vmatmul.bf16.gmra.mxu0 %v1756
          %v2206 = vpop.f32.mrf.mxu0
          %v2207 = vadd.f32 %v2158, %v2206
          %v2208 = vpop.f32.mrf.mxu0
          %v2209 = vadd.f32 %v2160, %v2208
          %2210 = vmatmul.bf16.gmra.mxu0 %v1758
          %v2211 = vpop.f32.mrf.mxu0
          %v2212 = vadd.f32 %v2163, %v2211
          %v2213 = vpop.f32.mrf.mxu0
          %v2214 = vadd.f32 %v2165, %v2213
          %2215 = vmatmul.bf16.gmra.mxu0 %v1760
          %v2216 = vpop.f32.mrf.mxu0
          %v2217 = vadd.f32 %v2168, %v2216
          %v2218 = vpop.f32.mrf.mxu0
          %v2219 = vadd.f32 %v2170, %v2218
          %2220 = vmatmul.bf16.gmra.mxu0 %v1762
          %v2221 = vpop.f32.mrf.mxu0
          %v2222 = vadd.f32 %v2173, %v2221
          %v2223 = vpop.f32.mrf.mxu0
          %v2224 = vadd.f32 %v2175, %v2223
          %2225 = vmatmul.bf16.gmra.mxu0 %v1764
          %v2226 = vpop.f32.mrf.mxu0
          %v2227 = vadd.f32 %v2178, %v2226
          %v2228 = vpop.f32.mrf.mxu0
          %v2229 = vadd.f32 %v2180, %v2228
          %2230 = vmatmul.bf16.gmra.mxu0 %v1766
          %v2231 = vpop.f32.mrf.mxu0
          %v2232 = vadd.f32 %v2183, %v2231
          %v2233 = vpop.f32.mrf.mxu0
          %v2234 = vadd.f32 %v2185, %v2233
          %2235 = vmatmul.bf16.gmra.mxu0 %v1768
          %v2236 = vpop.f32.mrf.mxu0
          %v2237 = vadd.f32 %v2188, %v2236
          %v2238 = vpop.f32.mrf.mxu0
          %v2239 = vadd.f32 %v2190, %v2238
          %2240 = vdwg.mxu0
          %v2241 = vmax.f32 %v2202, 0.0
          %v2242 = vmax.f32 %v2204, 0.0
          %v2243 = vmax.f32 %v2207, 0.0
          %v2244 = vmax.f32 %v2209, 0.0
          %v2245 = vmax.f32 %v2212, 0.0
          %v2246 = vmax.f32 %v2214, 0.0
          %v2247 = vmax.f32 %v2217, 0.0
          %v2248 = vmax.f32 %v2219, 0.0
          %v2249 = vmax.f32 %v2222, 0.0
          %v2250 = vmax.f32 %v2224, 0.0
          %v2251 = vmax.f32 %v2227, 0.0
          %v2252 = vmax.f32 %v2229, 0.0
          %v2253 = vmax.f32 %v2232, 0.0
          %v2254 = vmax.f32 %v2234, 0.0
          %v2255 = vmax.f32 %v2237, 0.0
          %v2256 = vmax.f32 %v2239, 0.0
          %v2257 = vpack.c.bf16 %v1997, %v1996
          %v2258 = vpack.c.bf16 %v2242, %v2241
          %v2259 = vpack.c.bf16 %v1999, %v1998
          %v2260 = vpack.c.bf16 %v2244, %v2243
          %v2261 = vpack.c.bf16 %v2001, %v2000
          %v2262 = vpack.c.bf16 %v2246, %v2245
          %v2263 = vpack.c.bf16 %v2003, %v2002
          %v2264 = vpack.c.bf16 %v2248, %v2247
          %v2265 = vpack.c.bf16 %v2005, %v2004
          %v2266 = vpack.c.bf16 %v2250, %v2249
          %v2267 = vpack.c.bf16 %v2007, %v2006
          %v2268 = vpack.c.bf16 %v2252, %v2251
          %v2269 = vpack.c.bf16 %v2009, %v2008
          %v2270 = vpack.c.bf16 %v2254, %v2253
          %v2271 = vpack.c.bf16 %v2011, %v2010
          %v2272 = vpack.c.bf16 %v2256, %v2255
          %v2273 = vld [vmem:[%s4] sm:$0xf]
          %v2274 = vld [vmem:[%s4 + $0x4] sm:$0xf]
          %v2275 = vld [vmem:[%s4 + $0x8] sm:$0xf]
          %v2276 = vld [vmem:[%s4 + $0xc] sm:$0xf]
          %v2277 = vld [vmem:[%s4 + $0x10] sm:$0xf]
          %v2278 = vld [vmem:[%s4 + $0x14] sm:$0xf]
          %v2279 = vld [vmem:[%s4 + $0x18] sm:$0xf]
          %v2280 = vld [vmem:[%s4 + $0x1c] sm:$0xf]
          %v2281 = vld [vmem:[%s4 + $0x20] sm:$0xf]
          %v2282 = vld [vmem:[%s4 + $0x24] sm:$0xf]
          %v2283 = vld [vmem:[%s4 + $0x28] sm:$0xf]
          %v2284 = vld [vmem:[%s4 + $0x2c] sm:$0xf]
          %v2285 = vld [vmem:[%s4 + $0x30] sm:$0xf]
          %v2286 = vld [vmem:[%s4 + $0x34] sm:$0xf]
          %v2287 = vld [vmem:[%s4 + $0x38] sm:$0xf]
          %v2288 = vld [vmem:[%s4 + $0x3c] sm:$0xf]
          %v2289 = vld [vmem:[%s4 + $0x40] sm:$0xf]
          %v2290 = vld [vmem:[%s4 + $0x44] sm:$0xf]
          %v2291 = vld [vmem:[%s4 + $0x48] sm:$0xf]
          %v2292 = vld [vmem:[%s4 + $0x4c] sm:$0xf]
          %v2293 = vld [vmem:[%s4 + $0x50] sm:$0xf]
          %v2294 = vld [vmem:[%s4 + $0x54] sm:$0xf]
          %v2295 = vld [vmem:[%s4 + $0x58] sm:$0xf]
          %v2296 = vld [vmem:[%s4 + $0x5c] sm:$0xf]
          %v2297 = vld [vmem:[%s4 + $0x60] sm:$0xf]
          %v2298 = vld [vmem:[%s4 + $0x64] sm:$0xf]
          %v2299 = vld [vmem:[%s4 + $0x68] sm:$0xf]
          %v2300 = vld [vmem:[%s4 + $0x6c] sm:$0xf]
          %v2301 = vld [vmem:[%s4 + $0x70] sm:$0xf]
          %v2302 = vld [vmem:[%s4 + $0x74] sm:$0xf]
          %v2303 = vld [vmem:[%s4 + $0x78] sm:$0xf]
          %v2304 = vld [vmem:[%s4 + $0x7c] sm:$0xf]
          %v2305 = vperm.slane %v1529, 2
          %v2338 = vunpack.c.l.b16 %v2273
          %v2339 = vunpack.c.l.b16 %v2274
          %v2340 = vunpack.c.l.b16 %v2275
          %v2341 = vunpack.c.l.b16 %v2276
          %v2342 = vunpack.c.l.b16 %v2277
          %v2343 = vunpack.c.l.b16 %v2278
          %v2344 = vunpack.c.l.b16 %v2279
          %v2345 = vunpack.c.l.b16 %v2280
          %v2346 = vunpack.c.l.b16 %v2281
          %v2347 = vunpack.c.l.b16 %v2282
          %v2348 = vunpack.c.l.b16 %v2283
          %v2349 = vunpack.c.l.b16 %v2284
          %v2350 = vunpack.c.l.b16 %v2285
          %v2351 = vunpack.c.l.b16 %v2286
          %v2352 = vunpack.c.l.b16 %v2287
          %v2353 = vunpack.c.l.b16 %v2288
          %v2354 = vunpack.c.l.b16 %v2289
          %v2355 = vunpack.c.l.b16 %v2290
          %v2356 = vunpack.c.l.b16 %v2291
          %v2357 = vunpack.c.l.b16 %v2292
          %v2358 = vunpack.c.l.b16 %v2293
          %v2359 = vunpack.c.l.b16 %v2294
          %v2360 = vunpack.c.l.b16 %v2295
          %v2361 = vunpack.c.l.b16 %v2296
          %v2362 = vunpack.c.l.b16 %v2297
          %v2363 = vunpack.c.l.b16 %v2298
          %v2364 = vunpack.c.l.b16 %v2299
          %v2365 = vunpack.c.l.b16 %v2300
          %v2366 = vunpack.c.l.b16 %v2301
          %v2367 = vunpack.c.l.b16 %v2302
          %v2368 = vunpack.c.l.b16 %v2303
          %v2369 = vunpack.c.l.b16 %v2304
          %v2370 = vpack.c.b16 %v2339, %v2338
          %v2371 = vpack.c.b16 %v2341, %v2340
          %v2372 = vpack.c.b16 %v2343, %v2342
          %v2373 = vpack.c.b16 %v2345, %v2344
          %v2374 = vpack.c.b16 %v2347, %v2346
          %v2375 = vpack.c.b16 %v2349, %v2348
          %v2376 = vpack.c.b16 %v2351, %v2350
          %v2377 = vpack.c.b16 %v2353, %v2352
          %v2378 = vpack.c.b16 %v2355, %v2354
          %v2379 = vpack.c.b16 %v2357, %v2356
          %v2380 = vpack.c.b16 %v2359, %v2358
          %v2381 = vpack.c.b16 %v2361, %v2360
          %v2382 = vpack.c.b16 %v2363, %v2362
          %v2383 = vpack.c.b16 %v2365, %v2364
          %v2384 = vpack.c.b16 %v2367, %v2366
          %v2385 = vpack.c.b16 %v2369, %v2368
          %2402 = vmatpush.bf16.msra.mxu0 %v2377
          %2403 = vmatpush.bf16.msra.mxu0 %v2376
          %2404 = vmatpush.bf16.msra.mxu0 %v2375
          %2405 = vmatpush.bf16.msra.mxu0 %v2374
          %2406 = vmatpush.bf16.msra.mxu0 %v2373
          %2407 = vmatpush.bf16.msra.mxu0 %v2372
          %2408 = vmatpush.bf16.msra.mxu0 %v2371
          %2409 = vmatpush.bf16.msra.mxu0 %v2370
          %2410 = vmatmul.bf16.gmra.mxu0 %v2257
          %v2411 = vpop.f32.mrf.mxu0
          %v2412 = vadd.f32 %v2305, %v2411
          %v2413 = vpop.f32.mrf.mxu0
          %v2414 = vadd.f32 %v2305, %v2413
          %2415 = vmatmul.bf16.gmra.mxu0 %v2259
          %v2416 = vpop.f32.mrf.mxu0
          %v2417 = vadd.f32 %v2305, %v2416
          %v2418 = vpop.f32.mrf.mxu0
          %v2419 = vadd.f32 %v2305, %v2418
          %2420 = vmatmul.bf16.gmra.mxu0 %v2261
          %v2421 = vpop.f32.mrf.mxu0
          %v2422 = vadd.f32 %v2305, %v2421
          %v2423 = vpop.f32.mrf.mxu0
          %v2424 = vadd.f32 %v2305, %v2423
          %2425 = vmatmul.bf16.gmra.mxu0 %v2263
          %v2426 = vpop.f32.mrf.mxu0
          %v2427 = vadd.f32 %v2305, %v2426
          %v2428 = vpop.f32.mrf.mxu0
          %v2429 = vadd.f32 %v2305, %v2428
          %2430 = vmatmul.bf16.gmra.mxu0 %v2265
          %v2431 = vpop.f32.mrf.mxu0
          %v2432 = vadd.f32 %v2305, %v2431
          %v2433 = vpop.f32.mrf.mxu0
          %v2434 = vadd.f32 %v2305, %v2433
          %2435 = vmatmul.bf16.gmra.mxu0 %v2267
          %v2436 = vpop.f32.mrf.mxu0
          %v2437 = vadd.f32 %v2305, %v2436
          %v2438 = vpop.f32.mrf.mxu0
          %v2439 = vadd.f32 %v2305, %v2438
          %2440 = vmatmul.bf16.gmra.mxu0 %v2269
          %v2441 = vpop.f32.mrf.mxu0
          %v2442 = vadd.f32 %v2305, %v2441
          %v2443 = vpop.f32.mrf.mxu0
          %v2444 = vadd.f32 %v2305, %v2443
          %2445 = vmatmul.bf16.gmra.mxu0 %v2271
          %v2446 = vpop.f32.mrf.mxu0
          %v2447 = vadd.f32 %v2305, %v2446
          %v2448 = vpop.f32.mrf.mxu0
          %v2449 = vadd.f32 %v2305, %v2448
          %2450 = vdwg.mxu0
          %2451 = vmatpush.bf16.msra.mxu0 %v2385
          %2452 = vmatpush.bf16.msra.mxu0 %v2384
          %2453 = vmatpush.bf16.msra.mxu0 %v2383
          %2454 = vmatpush.bf16.msra.mxu0 %v2382
          %2455 = vmatpush.bf16.msra.mxu0 %v2381
          %2456 = vmatpush.bf16.msra.mxu0 %v2380
          %2457 = vmatpush.bf16.msra.mxu0 %v2379
          %2458 = vmatpush.bf16.msra.mxu0 %v2378
          %2459 = vmatmul.bf16.gmra.mxu0 %v2258
          %v2460 = vpop.f32.mrf.mxu0
          %v2461 = vadd.f32 %v2412, %v2460
          %v2462 = vpop.f32.mrf.mxu0
          %v2463 = vadd.f32 %v2414, %v2462
          %2464 = vmatmul.bf16.gmra.mxu0 %v2260
          %v2465 = vpop.f32.mrf.mxu0
          %v2466 = vadd.f32 %v2417, %v2465
          %v2467 = vpop.f32.mrf.mxu0
          %v2468 = vadd.f32 %v2419, %v2467
          %2469 = vmatmul.bf16.gmra.mxu0 %v2262
          %v2470 = vpop.f32.mrf.mxu0
          %v2471 = vadd.f32 %v2422, %v2470
          %v2472 = vpop.f32.mrf.mxu0
          %v2473 = vadd.f32 %v2424, %v2472
          %2474 = vmatmul.bf16.gmra.mxu0 %v2264
          %v2475 = vpop.f32.mrf.mxu0
          %v2476 = vadd.f32 %v2427, %v2475
          %v2477 = vpop.f32.mrf.mxu0
          %v2478 = vadd.f32 %v2429, %v2477
          %2479 = vmatmul.bf16.gmra.mxu0 %v2266
          %v2480 = vpop.f32.mrf.mxu0
          %v2481 = vadd.f32 %v2432, %v2480
          %v2482 = vpop.f32.mrf.mxu0
          %v2483 = vadd.f32 %v2434, %v2482
          %2484 = vmatmul.bf16.gmra.mxu0 %v2268
          %v2485 = vpop.f32.mrf.mxu0
          %v2486 = vadd.f32 %v2437, %v2485
          %v2487 = vpop.f32.mrf.mxu0
          %v2488 = vadd.f32 %v2439, %v2487
          %2489 = vmatmul.bf16.gmra.mxu0 %v2270
          %v2490 = vpop.f32.mrf.mxu0
          %v2491 = vadd.f32 %v2442, %v2490
          %v2492 = vpop.f32.mrf.mxu0
          %v2493 = vadd.f32 %v2444, %v2492
          %2494 = vmatmul.bf16.gmra.mxu0 %v2272
          %v2495 = vpop.f32.mrf.mxu0
          %v2496 = vadd.f32 %v2447, %v2495
          %v2497 = vpop.f32.mrf.mxu0
          %v2498 = vadd.f32 %v2449, %v2497
          %2499 = vdwg.mxu0
          %v2500 = vlaneseq
          %v2501 = vand.u32 %v2500, 127
          %vm2502 = vcmp.lt.s32.totalorder %v2501, 4
          %v2503 = vxor.u32 %v2461, 2147483648
          %v2504 = vxor.u32 %v2463, 2147483648
          %v2505 = vxor.u32 %v2466, 2147483648
          %v2506 = vxor.u32 %v2468, 2147483648
          %v2507 = vxor.u32 %v2471, 2147483648
          %v2508 = vxor.u32 %v2473, 2147483648
          %v2509 = vxor.u32 %v2476, 2147483648
          %v2510 = vxor.u32 %v2478, 2147483648
          %v2511 = vxor.u32 %v2481, 2147483648
          %v2512 = vxor.u32 %v2483, 2147483648
          %v2513 = vxor.u32 %v2486, 2147483648
          %v2514 = vxor.u32 %v2488, 2147483648
          %v2515 = vxor.u32 %v2491, 2147483648
          %v2516 = vxor.u32 %v2493, 2147483648
          %v2517 = vxor.u32 %v2496, 2147483648
          %v2518 = vxor.u32 %v2498, 2147483648
          %v2519 = vmul.f32 %v2503, 1.442695
          %v2520 = vpow.pop %v2519
          %v2521 = vmul.f32 %v2504, 1.442695
          %v2522 = vpow.pop %v2521
          %v2523 = vmul.f32 %v2505, 1.442695
          %v2524 = vpow.pop %v2523
          %v2525 = vmul.f32 %v2506, 1.442695
          %v2526 = vpow.pop %v2525
          %v2527 = vmul.f32 %v2507, 1.442695
          %v2528 = vpow.pop %v2527
          %v2529 = vmul.f32 %v2508, 1.442695
          %v2530 = vpow.pop %v2529
          %v2531 = vmul.f32 %v2509, 1.442695
          %v2532 = vpow.pop %v2531
          %v2533 = vmul.f32 %v2510, 1.442695
          %v2534 = vpow.pop %v2533
          %v2535 = vmul.f32 %v2511, 1.442695
          %v2536 = vpow.pop %v2535
          %v2537 = vmul.f32 %v2512, 1.442695
          %v2538 = vpow.pop %v2537
          %v2539 = vmul.f32 %v2513, 1.442695
          %v2540 = vpow.pop %v2539
          %v2541 = vmul.f32 %v2514, 1.442695
          %v2542 = vpow.pop %v2541
          %v2543 = vmul.f32 %v2515, 1.442695
          %v2544 = vpow.pop %v2543
          %v2545 = vmul.f32 %v2516, 1.442695
          %v2546 = vpow.pop %v2545
          %v2547 = vmul.f32 %v2517, 1.442695
          %v2548 = vpow.pop %v2547
          %v2549 = vmul.f32 %v2518, 1.442695
          %v2550 = vpow.pop %v2549
          %v2551 = vadd.f32 %v2520, 1.0
          %v2552 = vadd.f32 %v2522, 1.0
          %v2553 = vadd.f32 %v2524, 1.0
          %v2554 = vadd.f32 %v2526, 1.0
          %v2555 = vadd.f32 %v2528, 1.0
          %v2556 = vadd.f32 %v2530, 1.0
          %v2557 = vadd.f32 %v2532, 1.0
          %v2558 = vadd.f32 %v2534, 1.0
          %v2559 = vadd.f32 %v2536, 1.0
          %v2560 = vadd.f32 %v2538, 1.0
          %v2561 = vadd.f32 %v2540, 1.0
          %v2562 = vadd.f32 %v2542, 1.0
          %v2563 = vadd.f32 %v2544, 1.0
          %v2564 = vadd.f32 %v2546, 1.0
          %v2565 = vadd.f32 %v2548, 1.0
          %v2566 = vadd.f32 %v2550, 1.0
          %v2567 = vrcp.pop %v2551
          %v2568 = vmul.f32 %v2551, %v2567
          %v2569 = vsub.f32 1.0, %v2568
          %v2570 = vmul.f32 %v2567, %v2569
          %v2571 = vadd.f32 %v2567, %v2570
          %vm2572 = vweird.f32 %v2551
          %vm2573 = vweird.f32 %v2567
          %vm2574 = vmor %vm2572, %vm2573
          %v2575 = vsel %vm2574, %v2567, %v2571
          %v2576 = vand.u32 2147483647, %v2551
          %vm2577 = vcmp.eq.f32.partialorder %v2576, 8.507059e+37
          %v2578 = vand.u32 %v2551, 2147483648
          %v2579 = vor.u32 1.1754944e-38, %v2578
          %v2580 = vsel %vm2577, %v2579, %v2575
          %v2581 = vmul.f32 1.0, %v2580
          %v2582 = vrcp.pop %v2552
          %v2583 = vmul.f32 %v2552, %v2582
          %v2584 = vsub.f32 1.0, %v2583
          %v2585 = vmul.f32 %v2582, %v2584
          %v2586 = vadd.f32 %v2582, %v2585
          %vm2587 = vweird.f32 %v2552
          %vm2588 = vweird.f32 %v2582
          %vm2589 = vmor %vm2587, %vm2588
          %v2590 = vsel %vm2589, %v2582, %v2586
          %v2591 = vand.u32 2147483647, %v2552
          %vm2592 = vcmp.eq.f32.partialorder %v2591, 8.507059e+37
          %v2593 = vand.u32 %v2552, 2147483648
          %v2594 = vor.u32 1.1754944e-38, %v2593
          %v2595 = vsel %vm2592, %v2594, %v2590
          %v2596 = vmul.f32 1.0, %v2595
          %v2597 = vrcp.pop %v2553
          %v2598 = vmul.f32 %v2553, %v2597
          %v2599 = vsub.f32 1.0, %v2598
          %v2600 = vmul.f32 %v2597, %v2599
          %v2601 = vadd.f32 %v2597, %v2600
          %vm2602 = vweird.f32 %v2553
          %vm2603 = vweird.f32 %v2597
          %vm2604 = vmor %vm2602, %vm2603
          %v2605 = vsel %vm2604, %v2597, %v2601
          %v2606 = vand.u32 2147483647, %v2553
          %vm2607 = vcmp.eq.f32.partialorder %v2606, 8.507059e+37
          %v2608 = vand.u32 %v2553, 2147483648
          %v2609 = vor.u32 1.1754944e-38, %v2608
          %v2610 = vsel %vm2607, %v2609, %v2605
          %v2611 = vmul.f32 1.0, %v2610
          %v2612 = vrcp.pop %v2554
          %v2613 = vmul.f32 %v2554, %v2612
          %v2614 = vsub.f32 1.0, %v2613
          %v2615 = vmul.f32 %v2612, %v2614
          %v2616 = vadd.f32 %v2612, %v2615
          %vm2617 = vweird.f32 %v2554
          %vm2618 = vweird.f32 %v2612
          %vm2619 = vmor %vm2617, %vm2618
          %v2620 = vsel %vm2619, %v2612, %v2616
          %v2621 = vand.u32 2147483647, %v2554
          %vm2622 = vcmp.eq.f32.partialorder %v2621, 8.507059e+37
          %v2623 = vand.u32 %v2554, 2147483648
          %v2624 = vor.u32 1.1754944e-38, %v2623
          %v2625 = vsel %vm2622, %v2624, %v2620
          %v2626 = vmul.f32 1.0, %v2625
          %v2627 = vrcp.pop %v2555
          %v2628 = vmul.f32 %v2555, %v2627
          %v2629 = vsub.f32 1.0, %v2628
          %v2630 = vmul.f32 %v2627, %v2629
          %v2631 = vadd.f32 %v2627, %v2630
          %vm2632 = vweird.f32 %v2555
          %vm2633 = vweird.f32 %v2627
          %vm2634 = vmor %vm2632, %vm2633
          %v2635 = vsel %vm2634, %v2627, %v2631
          %v2636 = vand.u32 2147483647, %v2555
          %vm2637 = vcmp.eq.f32.partialorder %v2636, 8.507059e+37
          %v2638 = vand.u32 %v2555, 2147483648
          %v2639 = vor.u32 1.1754944e-38, %v2638
          %v2640 = vsel %vm2637, %v2639, %v2635
          %v2641 = vmul.f32 1.0, %v2640
          %v2642 = vrcp.pop %v2556
          %v2643 = vmul.f32 %v2556, %v2642
          %v2644 = vsub.f32 1.0, %v2643
          %v2645 = vmul.f32 %v2642, %v2644
          %v2646 = vadd.f32 %v2642, %v2645
          %vm2647 = vweird.f32 %v2556
          %vm2648 = vweird.f32 %v2642
          %vm2649 = vmor %vm2647, %vm2648
          %v2650 = vsel %vm2649, %v2642, %v2646
          %v2651 = vand.u32 2147483647, %v2556
          %vm2652 = vcmp.eq.f32.partialorder %v2651, 8.507059e+37
          %v2653 = vand.u32 %v2556, 2147483648
          %v2654 = vor.u32 1.1754944e-38, %v2653
          %v2655 = vsel %vm2652, %v2654, %v2650
          %v2656 = vmul.f32 1.0, %v2655
          %v2657 = vrcp.pop %v2557
          %v2658 = vmul.f32 %v2557, %v2657
          %v2659 = vsub.f32 1.0, %v2658
          %v2660 = vmul.f32 %v2657, %v2659
          %v2661 = vadd.f32 %v2657, %v2660
          %vm2662 = vweird.f32 %v2557
          %vm2663 = vweird.f32 %v2657
          %vm2664 = vmor %vm2662, %vm2663
          %v2665 = vsel %vm2664, %v2657, %v2661
          %v2666 = vand.u32 2147483647, %v2557
          %vm2667 = vcmp.eq.f32.partialorder %v2666, 8.507059e+37
          %v2668 = vand.u32 %v2557, 2147483648
          %v2669 = vor.u32 1.1754944e-38, %v2668
          %v2670 = vsel %vm2667, %v2669, %v2665
          %v2671 = vmul.f32 1.0, %v2670
          %v2672 = vrcp.pop %v2558
          %v2673 = vmul.f32 %v2558, %v2672
          %v2674 = vsub.f32 1.0, %v2673
          %v2675 = vmul.f32 %v2672, %v2674
          %v2676 = vadd.f32 %v2672, %v2675
          %vm2677 = vweird.f32 %v2558
          %vm2678 = vweird.f32 %v2672
          %vm2679 = vmor %vm2677, %vm2678
          %v2680 = vsel %vm2679, %v2672, %v2676
          %v2681 = vand.u32 2147483647, %v2558
          %vm2682 = vcmp.eq.f32.partialorder %v2681, 8.507059e+37
          %v2683 = vand.u32 %v2558, 2147483648
          %v2684 = vor.u32 1.1754944e-38, %v2683
          %v2685 = vsel %vm2682, %v2684, %v2680
          %v2686 = vmul.f32 1.0, %v2685
          %v2687 = vrcp.pop %v2559
          %v2688 = vmul.f32 %v2559, %v2687
          %v2689 = vsub.f32 1.0, %v2688
          %v2690 = vmul.f32 %v2687, %v2689
          %v2691 = vadd.f32 %v2687, %v2690
          %vm2692 = vweird.f32 %v2559
          %vm2693 = vweird.f32 %v2687
          %vm2694 = vmor %vm2692, %vm2693
          %v2695 = vsel %vm2694, %v2687, %v2691
          %v2696 = vand.u32 2147483647, %v2559
          %vm2697 = vcmp.eq.f32.partialorder %v2696, 8.507059e+37
          %v2698 = vand.u32 %v2559, 2147483648
          %v2699 = vor.u32 1.1754944e-38, %v2698
          %v2700 = vsel %vm2697, %v2699, %v2695
          %v2701 = vmul.f32 1.0, %v2700
          %v2702 = vrcp.pop %v2560
          %v2703 = vmul.f32 %v2560, %v2702
          %v2704 = vsub.f32 1.0, %v2703
          %v2705 = vmul.f32 %v2702, %v2704
          %v2706 = vadd.f32 %v2702, %v2705
          %vm2707 = vweird.f32 %v2560
          %vm2708 = vweird.f32 %v2702
          %vm2709 = vmor %vm2707, %vm2708
          %v2710 = vsel %vm2709, %v2702, %v2706
          %v2711 = vand.u32 2147483647, %v2560
          %vm2712 = vcmp.eq.f32.partialorder %v2711, 8.507059e+37
          %v2713 = vand.u32 %v2560, 2147483648
          %v2714 = vor.u32 1.1754944e-38, %v2713
          %v2715 = vsel %vm2712, %v2714, %v2710
          %v2716 = vmul.f32 1.0, %v2715
          %v2717 = vrcp.pop %v2561
          %v2718 = vmul.f32 %v2561, %v2717
          %v2719 = vsub.f32 1.0, %v2718
          %v2720 = vmul.f32 %v2717, %v2719
          %v2721 = vadd.f32 %v2717, %v2720
          %vm2722 = vweird.f32 %v2561
          %vm2723 = vweird.f32 %v2717
          %vm2724 = vmor %vm2722, %vm2723
          %v2725 = vsel %vm2724, %v2717, %v2721
          %v2726 = vand.u32 2147483647, %v2561
          %vm2727 = vcmp.eq.f32.partialorder %v2726, 8.507059e+37
          %v2728 = vand.u32 %v2561, 2147483648
          %v2729 = vor.u32 1.1754944e-38, %v2728
          %v2730 = vsel %vm2727, %v2729, %v2725
          %v2731 = vmul.f32 1.0, %v2730
          %v2732 = vrcp.pop %v2562
          %v2733 = vmul.f32 %v2562, %v2732
          %v2734 = vsub.f32 1.0, %v2733
          %v2735 = vmul.f32 %v2732, %v2734
          %v2736 = vadd.f32 %v2732, %v2735
          %vm2737 = vweird.f32 %v2562
          %vm2738 = vweird.f32 %v2732
          %vm2739 = vmor %vm2737, %vm2738
          %v2740 = vsel %vm2739, %v2732, %v2736
          %v2741 = vand.u32 2147483647, %v2562
          %vm2742 = vcmp.eq.f32.partialorder %v2741, 8.507059e+37
          %v2743 = vand.u32 %v2562, 2147483648
          %v2744 = vor.u32 1.1754944e-38, %v2743
          %v2745 = vsel %vm2742, %v2744, %v2740
          %v2746 = vmul.f32 1.0, %v2745
          %v2747 = vrcp.pop %v2563
          %v2748 = vmul.f32 %v2563, %v2747
          %v2749 = vsub.f32 1.0, %v2748
          %v2750 = vmul.f32 %v2747, %v2749
          %v2751 = vadd.f32 %v2747, %v2750
          %vm2752 = vweird.f32 %v2563
          %vm2753 = vweird.f32 %v2747
          %vm2754 = vmor %vm2752, %vm2753
          %v2755 = vsel %vm2754, %v2747, %v2751
          %v2756 = vand.u32 2147483647, %v2563
          %vm2757 = vcmp.eq.f32.partialorder %v2756, 8.507059e+37
          %v2758 = vand.u32 %v2563, 2147483648
          %v2759 = vor.u32 1.1754944e-38, %v2758
          %v2760 = vsel %vm2757, %v2759, %v2755
          %v2761 = vmul.f32 1.0, %v2760
          %v2762 = vrcp.pop %v2564
          %v2763 = vmul.f32 %v2564, %v2762
          %v2764 = vsub.f32 1.0, %v2763
          %v2765 = vmul.f32 %v2762, %v2764
          %v2766 = vadd.f32 %v2762, %v2765
          %vm2767 = vweird.f32 %v2564
          %vm2768 = vweird.f32 %v2762
          %vm2769 = vmor %vm2767, %vm2768
          %v2770 = vsel %vm2769, %v2762, %v2766
          %v2771 = vand.u32 2147483647, %v2564
          %vm2772 = vcmp.eq.f32.partialorder %v2771, 8.507059e+37
          %v2773 = vand.u32 %v2564, 2147483648
          %v2774 = vor.u32 1.1754944e-38, %v2773
          %v2775 = vsel %vm2772, %v2774, %v2770
          %v2776 = vmul.f32 1.0, %v2775
          %v2777 = vrcp.pop %v2565
          %v2778 = vmul.f32 %v2565, %v2777
          %v2779 = vsub.f32 1.0, %v2778
          %v2780 = vmul.f32 %v2777, %v2779
          %v2781 = vadd.f32 %v2777, %v2780
          %vm2782 = vweird.f32 %v2565
          %vm2783 = vweird.f32 %v2777
          %vm2784 = vmor %vm2782, %vm2783
          %v2785 = vsel %vm2784, %v2777, %v2781
          %v2786 = vand.u32 2147483647, %v2565
          %vm2787 = vcmp.eq.f32.partialorder %v2786, 8.507059e+37
          %v2788 = vand.u32 %v2565, 2147483648
          %v2789 = vor.u32 1.1754944e-38, %v2788
          %v2790 = vsel %vm2787, %v2789, %v2785
          %v2791 = vmul.f32 1.0, %v2790
          %v2792 = vrcp.pop %v2566
          %v2793 = vmul.f32 %v2566, %v2792
          %v2794 = vsub.f32 1.0, %v2793
          %v2795 = vmul.f32 %v2792, %v2794
          %v2796 = vadd.f32 %v2792, %v2795
          %vm2797 = vweird.f32 %v2566
          %vm2798 = vweird.f32 %v2792
          %vm2799 = vmor %vm2797, %vm2798
          %v2800 = vsel %vm2799, %v2792, %v2796
          %v2801 = vand.u32 2147483647, %v2566
          %vm2802 = vcmp.eq.f32.partialorder %v2801, 8.507059e+37
          %v2803 = vand.u32 %v2566, 2147483648
          %v2804 = vor.u32 1.1754944e-38, %v2803
          %v2805 = vsel %vm2802, %v2804, %v2800
          %v2806 = vmul.f32 1.0, %v2805
          %v2807 = vsel %vm2502, %v2581, %v2461
          %v2808 = vsel %vm2502, %v2596, %v2463
          %v2809 = vsel %vm2502, %v2611, %v2466
          %v2810 = vsel %vm2502, %v2626, %v2468
          %v2811 = vsel %vm2502, %v2641, %v2471
          %v2812 = vsel %vm2502, %v2656, %v2473
          %v2813 = vsel %vm2502, %v2671, %v2476
          %v2814 = vsel %vm2502, %v2686, %v2478
          %v2815 = vsel %vm2502, %v2701, %v2481
          %v2816 = vsel %vm2502, %v2716, %v2483
          %v2817 = vsel %vm2502, %v2731, %v2486
          %v2818 = vsel %vm2502, %v2746, %v2488
          %v2819 = vsel %vm2502, %v2761, %v2491
          %v2820 = vsel %vm2502, %v2776, %v2493
          %v2821 = vsel %vm2502, %v2791, %v2496
          %v2822 = vsel %vm2502, %v2806, %v2498
          %2823 = vst [vmem:[%s391] sm:$0xff] %v2807
          %2824 = vst [vmem:[%s391 + $0x8] sm:$0xff] %v2808
          %2825 = vst [vmem:[%s391 + $0x10] sm:$0xff] %v2809
          %2826 = vst [vmem:[%s391 + $0x18] sm:$0xff] %v2810
          %2827 = vst [vmem:[%s391 + $0x20] sm:$0xff] %v2811
          %2828 = vst [vmem:[%s391 + $0x28] sm:$0xff] %v2812
          %2829 = vst [vmem:[%s391 + $0x30] sm:$0xff] %v2813
          %2830 = vst [vmem:[%s391 + $0x38] sm:$0xff] %v2814
          %2831 = vst [vmem:[%s391 + $0x40] sm:$0xff] %v2815
          %2832 = vst [vmem:[%s391 + $0x48] sm:$0xff] %v2816
          %2833 = vst [vmem:[%s391 + $0x50] sm:$0xff] %v2817
          %2834 = vst [vmem:[%s391 + $0x58] sm:$0xff] %v2818
          %2835 = vst [vmem:[%s391 + $0x60] sm:$0xff] %v2819
          %2836 = vst [vmem:[%s391 + $0x68] sm:$0xff] %v2820
          %2837 = vst [vmem:[%s391 + $0x70] sm:$0xff] %v2821
          %2838 = vst [vmem:[%s391 + $0x78] sm:$0xff] %v2822
        $region90: #{momi_forward.1} parent=77 // pred_fallthru
          _
        %s2839 = smul.u32 16, %s21
        %p2840 = scmp.lt.s32.totalorder %s2839, 15
        %s2841 = scalar_select %p2840, %s2839, 15
        %s2842 = smul.addr %s2841, 8
        %s2843 = scalar_lea.vmem %s6, %s2842
        // Predicated region
        $region91: #{momi_forward.1} parent=77 // pred_check
          %p2844 = pneg %p185
        $region92: #{momi_forward.1} parent=77 // pred_check_branch
          %2846 = sbr.rel (%p2844) target = $region94
        $region93: #{momi_forward.1} parent=77 // pred_region
          %s2847 = smul.u32 16, %s21
        $region94: #{momi_forward.1} parent=77 // pred_fallthru
          _
        // Predicated region
        $region95: #{momi_forward.1} parent=77 // pred_check
          %p2848 = pneg %p185
        $region96: #{momi_forward.1} parent=77 // pred_check_branch
          %2850 = sbr.rel (%p2848) target = $region98
        $region97: #{momi_forward.1} parent=77 // pred_region
          %s2851 = smul.u32 16, %s21
          %p2852 = scmp.lt.s32.totalorder %s2851, 15
          %s2853 = scalar_select %p2852, %s2851, 15
          %s2854 = smul.addr %s2853, 8
          %s2855 = scalar_lea.vmem %s6, %s2854
        $region98: #{momi_forward.1} parent=77 // pred_fallthru
          _
      $region78: #{momi_forward.1} parent=5 // pred_fallthru
        _
      %p2856 = scmp.le.s32.totalorder 2, %s12
      // Predicated region
      $region99: #{momi_forward.1} parent=5 // pred_check
        %p2857 = pneg %p2856
      $region100: #{momi_forward.1} parent=5 // pred_check_branch
        %2859 = sbr.rel (%p2857) target = $region102
      $region101: #{momi_forward.1} parent=5 // pred_region
        %s2860 = ssub.s32 %s12, 2
      $region102: #{momi_forward.1} parent=5 // pred_fallthru
        _
    $region6: #{momi_forward.1} parent=1 // loop_footer
      %s16 = sadd.s32 1, %s12
    $region7: #{momi_forward.1} parent=1 // loop_footer_branch
      %11 = sbr.rel target = $region3
    $region8: #{momi_forward.1} parent=1 // loop_exit
      _

</llo_original>
